<compile_context>
chip_gen: v5e
topology: v5e:2x2
jax: 0.10.0
libtpu: 0.0.40
codegen_flags: <defaults>
</compile_context>

<pallas_src>
import functools

import jax
import jax.numpy as jnp
from jax.experimental import pallas as pl
from jax.experimental.pallas import tpu as pltpu


def _mc_init_embedding_kernel(loc_ref, dist_ref,
                              w1l_ref, w1d_ref, b1_ref,
                              w2_ref, b2_ref, w3_ref, b3_ref,
                              out_ref):
    # ---- layer 1, distance branch on the MXU -------------------------------
    # w1d is (N, E) with its left H columns zeroed, so the result already
    # occupies the dist half of the fused E = 2H feature axis.  K = N = 500 is
    # not lane-aligned; Mosaic masks the contraction.
    h = jnp.dot(dist_ref[...], w1d_ref[...], preferred_element_type=jnp.float32)
    h = h + b1_ref[...]

    # ---- layer 1, location branch on the VPU -------------------------------
    # K = dim_point = 2 would waste an MXU push; two broadcast FMAs instead.
    # w1l is (dp, E) with its right H columns zeroed.
    loc = loc_ref[...].astype(jnp.float32)
    w1l = w1l_ref[...]
    for k in range(loc_ref.shape[-1]):          # dp is static -> unrolled at trace
        h = h + loc[:, k:k + 1] * w1l[k:k + 1, :]
    h = jnp.maximum(h, 0.0)

    # ---- layers 2 and 3: block-diagonal fused matmuls (full lane width) ----
    h = jnp.dot(h, w2_ref[...], preferred_element_type=jnp.float32) + b2_ref[...]
    h = jnp.maximum(h, 0.0)
    h = jnp.dot(h, w3_ref[...], preferred_element_type=jnp.float32) + b3_ref[...]

    # Single lane-dense store of the already-concatenated [loc_emb | dist_emb].
    # (Ragged last grid block: out-of-range rows are masked by Pallas.)
    out_ref[...] = h.astype(out_ref.dtype)


def _pack_params(params, dist_dtype):
    """Pack the 6 Linear layers into fused / block-diagonal weights."""
    dp, H = params["wl1"].shape
    N = params["wd1"].shape[0]
    f32 = jnp.float32
    zH = jnp.zeros((H, H), f32)

    # Layer 1: loc -> columns [0, H), dist -> columns [H, 2H).
    w1l = jnp.concatenate([params["wl1"], jnp.zeros((dp, H), f32)], axis=1)   # (dp, E)
    w1d = jnp.concatenate([jnp.zeros((N, H), f32), params["wd1"]], axis=1)    # (N, E)
    b1 = jnp.concatenate([params["bl1"], params["bd1"]], axis=1)              # (1, E)

    # Layers 2 / 3: block-diagonal (E, E).
    w2 = jnp.concatenate(
        [jnp.concatenate([params["wl2"], zH], axis=1),
         jnp.concatenate([zH, params["wd2"]], axis=1)], axis=0)
    b2 = jnp.concatenate([params["bl2"], params["bd2"]], axis=1)
    w3 = jnp.concatenate(
        [jnp.concatenate([params["wl3"], zH], axis=1),
         jnp.concatenate([zH, params["wd3"]], axis=1)], axis=0)
    b3 = jnp.concatenate([params["bl3"], params["bd3"]], axis=1)

    # Match the distances operand dtype on the dominant layer-1 weight only.
    return w1l, w1d.astype(dist_dtype), b1, w2, b2, w3, b3


def mc_init_embedding2(locations, distances, params, *, tile_rows=256):
    """locations: [B, N, dim_point], distances: [B, N, N] -> [B, N, embedding_dim].

    Pass `distances` already in bf16 if the accuracy budget allows: the kernel
    consumes the caller's dtype directly (no wrapper-side cast/copy), which
    halves the dominant HBM read on all generations.
    """
    B, N, dp = locations.shape
    assert distances.shape == (B, N, N)
    H = params["wl1"].shape[1]
    E = 2 * H
    rows = B * N

    tile_rows = max(8, (min(int(tile_rows), rows) // 8) * 8)  # keep (8, _) blocks
    grid = (pl.cdiv(rows, tile_rows),)                        # ragged last block OK

    # Contiguous 2-D views -- metadata reshapes, no data movement, no padding.
    loc2d = locations.reshape(rows, dp).astype(jnp.float32)
    dist2d = distances.reshape(rows, N)

    w1l, w1d, b1, w2, b2, w3, b3 = _pack_params(params, dist2d.dtype)

    # Constant index_map -> weights are fetched once, not re-DMA'd per grid step.
    full = lambda shape: pl.BlockSpec(shape, lambda i: (0, 0))

    weight_bytes = sum(int(w.size) * w.dtype.itemsize
                       for w in (w1l, w1d, b1, w2, b2, w3, b3))
    cost = pl.CostEstimate(
        flops=2 * rows * E * (N + dp + 2 * E),
        transcendentals=0,
        bytes_accessed=int(dist2d.size) * dist2d.dtype.itemsize
        + int(loc2d.size) * 4 + rows * E * 4 + weight_bytes,
    )

    out2d = pl.pallas_call(
        _mc_init_embedding_kernel,
        out_shape=jax.ShapeDtypeStruct((rows, E), jnp.float32),
        grid_spec=pltpu.PrefetchScalarGridSpec(
            num_scalar_prefetch=0,
            grid=grid,
            in_specs=[
                pl.BlockSpec((tile_rows, dp), lambda i: (i, 0)),  # locations tile
                pl.BlockSpec((tile_rows, N), lambda i: (i, 0)),   # distances tile
                full((dp, E)), full((N, E)), full((1, E)),        # fused layer 1
                full((E, E)), full((1, E)),                       # fused layer 2
                full((E, E)), full((1, E)),                       # fused layer 3
            ],
            out_specs=pl.BlockSpec((tile_rows, E), lambda i: (i, 0)),
        ),
        compiler_params=pltpu.CompilerParams(
            dimension_semantics=("parallel",)),                   # megacore shard
        cost_estimate=cost,
    )(loc2d, dist2d, w1l, w1d, b1, w2, b2, w3, b3)

    # Exact (rows, E) output from the kernel; reshape is a free metadata op.
    return out2d.reshape(B, N, E)


def init_params(key, *, dim_point, n_points, embedding_dim):
    """torch.nn.Linear-style init (U[-1/sqrt(fan_in), 1/sqrt(fan_in)]).
    Weights stored transposed vs torch ([in, out]) so the kernel does x @ W."""
    H = embedding_dim // 2
    keys = jax.random.split(key, 12)

    def lin(kw, kb, fan_in, fan_out):
        bound = 1.0 / jnp.sqrt(fan_in)
        w = jax.random.uniform(kw, (fan_in, fan_out), jnp.float32, -bound, bound)
        b = jax.random.uniform(kb, (1, fan_out), jnp.float32, -bound, bound)
        return w, b

    p = {}
    p["wl1"], p["bl1"] = lin(keys[0], keys[1], dim_point, H)
    p["wl2"], p["bl2"] = lin(keys[2], keys[3], H, H)
    p["wl3"], p["bl3"] = lin(keys[4], keys[5], H, H)
    p["wd1"], p["bd1"] = lin(keys[6], keys[7], n_points, H)
    p["wd2"], p["bd2"] = lin(keys[8], keys[9], H, H)
    p["wd3"], p["bd3"] = lin(keys[10], keys[11], H, H)
    return p


def reference(locations, distances, p):
    """Pure-JAX reference of the PyTorch forward (un-fused, f32)."""
    relu = lambda x: jnp.maximum(x, 0.0)
    l = relu(locations @ p["wl1"] + p["bl1"])
    l = relu(l @ p["wl2"] + p["bl2"])
    l = l @ p["wl3"] + p["bl3"]
    d = relu(distances @ p["wd1"] + p["bd1"])
    d = relu(d @ p["wd2"] + p["bd2"])
    d = d @ p["wd3"] + p["bd3"]
    return jnp.concatenate([l, d], axis=-1)


if __name__ == "__main__":
    # Module constants: dim_point = 2, n_points = 500.  embedding_dim = 128 so the
    # fused feature axis E = 128 gives lane-dense output stores.
    B = 2
    N_POINTS = 500
    DIM_POINT = 2
    EMBEDDING_DIM = 128

    key = jax.random.PRNGKey(0)
    k_loc, k_dist, k_par = jax.random.split(key, 3)

    locations = jax.random.uniform(k_loc, (B, N_POINTS, DIM_POINT), jnp.float32)
    distances = jax.random.uniform(k_dist, (B, N_POINTS, N_POINTS), jnp.float32)
    params = init_params(k_par, dim_point=DIM_POINT, n_points=N_POINTS,
                         embedding_dim=EMBEDDING_DIM)

    ref = reference(locations, distances, params)

    run = jax.jit(mc_init_embedding2, static_argnames=("tile_rows",))

    # f32 path -- exact module semantics.  rows = 1000, tile_rows = 256 ->
    # cdiv grid of 4 steps (ragged last block exercises the masked-store path,
    # and each v7x TensorCore gets 2 pipelined steps).
    out = run(locations, distances, params, tile_rows=256)
    out = jax.block_until_ready(out)
    assert out.shape == (B, N_POINTS, EMBEDDING_DIM)
    assert jnp.allclose(out, ref, atol=1e-3, rtol=1e-3), "f32 kernel mismatch vs reference"

    # bf16-distances path: cast ONCE upstream (no wrapper-side copy); halves the
    # dominant HBM read on v5e/v6e/v7x.  Checked against the f32 reference with
    # loosened tolerance.
    distances_bf16 = distances.astype(jnp.bfloat16)
    out_bf16 = run(locations, distances_bf16, params, tile_rows=256)
    out_bf16 = jax.block_until_ready(out_bf16)
    assert jnp.allclose(out_bf16, ref, atol=5e-2, rtol=5e-2), "bf16 kernel mismatch vs reference"

    print("KERNEL_OK")
</pallas_src>

<mosaic_0001>
module attributes {stable_mosaic.version = 11 : i64} {
  func.func @_mc_init_embedding_kernel(%arg0: i32, %arg1: memref<256x2xf32, #tpu.memory_space<vmem>>, %arg2: memref<256x500xf32, #tpu.memory_space<vmem>>, %arg3: memref<2x128xf32, #tpu.memory_space<vmem>>, %arg4: memref<500x128xf32, #tpu.memory_space<vmem>>, %arg5: memref<1x128xf32, #tpu.memory_space<vmem>>, %arg6: memref<128x128xf32, #tpu.memory_space<vmem>>, %arg7: memref<1x128xf32, #tpu.memory_space<vmem>>, %arg8: memref<128x128xf32, #tpu.memory_space<vmem>>, %arg9: memref<1x128xf32, #tpu.memory_space<vmem>>, %arg10: memref<256x128xf32, #tpu.memory_space<vmem>>) attributes {dimension_semantics = [#tpu.dimension_semantics<parallel>], iteration_bounds = array<i64: 4>, scalar_prefetch = 0 : i64, scratch_operands = 0 : i64, tpu.core_type = #tpu.core_type<tc>, window_params = [{transform_indices = @transform_0, window_bounds = array<i64: 256, 2>}, {transform_indices = @transform_1, window_bounds = array<i64: 256, 500>}, {pipeline_mode = #tpu.pipeline_mode<synchronous>, transform_indices = @transform_2, window_bounds = array<i64: 2, 128>}, {pipeline_mode = #tpu.pipeline_mode<synchronous>, transform_indices = @transform_3, window_bounds = array<i64: 500, 128>}, {pipeline_mode = #tpu.pipeline_mode<synchronous>, transform_indices = @transform_4, window_bounds = array<i64: 1, 128>}, {pipeline_mode = #tpu.pipeline_mode<synchronous>, transform_indices = @transform_5, window_bounds = array<i64: 128, 128>}, {pipeline_mode = #tpu.pipeline_mode<synchronous>, transform_indices = @transform_6, window_bounds = array<i64: 1, 128>}, {pipeline_mode = #tpu.pipeline_mode<synchronous>, transform_indices = @transform_7, window_bounds = array<i64: 128, 128>}, {pipeline_mode = #tpu.pipeline_mode<synchronous>, transform_indices = @transform_8, window_bounds = array<i64: 1, 128>}, {transform_indices = @transform_9, window_bounds = array<i64: 256, 128>}]} {
    %c0 = arith.constant 0 : index
    %c0_0 = arith.constant 0 : index
    %0 = vector.load %arg2[%c0, %c0_0] : memref<256x500xf32, #tpu.memory_space<vmem>>, vector<256x500xf32>
    %c0_1 = arith.constant 0 : index
    %c0_2 = arith.constant 0 : index
    %1 = vector.load %arg4[%c0_1, %c0_2] : memref<500x128xf32, #tpu.memory_space<vmem>>, vector<500x128xf32>
    %cst = arith.constant dense<0.000000e+00> : vector<256x128xf32>
    %2 = tpu.matmul %0, %1, %cst {dimension_numbers = #tpu.dot_dimension_numbers<[1], [0], [0], [1], [0, 0, 1, 1], [], []>} : vector<256x500xf32>, vector<500x128xf32>, vector<256x128xf32> -> vector<256x128xf32>
    %c0_3 = arith.constant 0 : index
    %c0_4 = arith.constant 0 : index
    %3 = vector.load %arg5[%c0_3, %c0_4] : memref<1x128xf32, #tpu.memory_space<vmem>>, vector<1x128xf32>
    %4 = vector.broadcast %3 : vector<1x128xf32> to vector<256x128xf32>
    %5 = arith.addf %2, %4 : vector<256x128xf32>
    %c0_5 = arith.constant 0 : index
    %c0_6 = arith.constant 0 : index
    %6 = vector.load %arg1[%c0_5, %c0_6] : memref<256x2xf32, #tpu.memory_space<vmem>>, vector<256x2xf32>
    %c0_7 = arith.constant 0 : index
    %c0_8 = arith.constant 0 : index
    %7 = vector.load %arg3[%c0_7, %c0_8] : memref<2x128xf32, #tpu.memory_space<vmem>>, vector<2x128xf32>
    %8 = vector.extract_strided_slice %6 {offsets = [0, 0], sizes = [256, 1], strides = [1, 1]} : vector<256x2xf32> to vector<256x1xf32>
    %9 = vector.extract_strided_slice %7 {offsets = [0, 0], sizes = [1, 128], strides = [1, 1]} : vector<2x128xf32> to vector<1x128xf32>
    %10 = vector.broadcast %8 : vector<256x1xf32> to vector<256x128xf32>
    %11 = vector.broadcast %9 : vector<1x128xf32> to vector<256x128xf32>
    %12 = arith.mulf %10, %11 : vector<256x128xf32>
    %13 = arith.addf %5, %12 : vector<256x128xf32>
    %14 = vector.extract_strided_slice %6 {offsets = [0, 1], sizes = [256, 1], strides = [1, 1]} : vector<256x2xf32> to vector<256x1xf32>
    %15 = vector.extract_strided_slice %7 {offsets = [1, 0], sizes = [1, 128], strides = [1, 1]} : vector<2x128xf32> to vector<1x128xf32>
    %16 = vector.broadcast %14 : vector<256x1xf32> to vector<256x128xf32>
    %17 = vector.broadcast %15 : vector<1x128xf32> to vector<256x128xf32>
    %18 = arith.mulf %16, %17 : vector<256x128xf32>
    %19 = arith.addf %13, %18 : vector<256x128xf32>
    %cst_9 = arith.constant 0.000000e+00 : f32
    %20 = vector.broadcast %cst_9 : f32 to vector<256x128xf32>
    %21 = arith.maximumf %19, %20 : vector<256x128xf32>
    %c0_10 = arith.constant 0 : index
    %c0_11 = arith.constant 0 : index
    %22 = vector.load %arg6[%c0_10, %c0_11] : memref<128x128xf32, #tpu.memory_space<vmem>>, vector<128x128xf32>
    %cst_12 = arith.constant dense<0.000000e+00> : vector<256x128xf32>
    %23 = tpu.matmul %21, %22, %cst_12 {dimension_numbers = #tpu.dot_dimension_numbers<[1], [0], [0], [1], [0, 0, 1, 1], [], []>} : vector<256x128xf32>, vector<128x128xf32>, vector<256x128xf32> -> vector<256x128xf32>
    %c0_13 = arith.constant 0 : index
    %c0_14 = arith.constant 0 : index
    %24 = vector.load %arg7[%c0_13, %c0_14] : memref<1x128xf32, #tpu.memory_space<vmem>>, vector<1x128xf32>
    %25 = vector.broadcast %24 : vector<1x128xf32> to vector<256x128xf32>
    %26 = arith.addf %23, %25 : vector<256x128xf32>
    %cst_15 = arith.constant 0.000000e+00 : f32
    %27 = vector.broadcast %cst_15 : f32 to vector<256x128xf32>
    %28 = arith.maximumf %26, %27 : vector<256x128xf32>
    %c0_16 = arith.constant 0 : index
    %c0_17 = arith.constant 0 : index
    %29 = vector.load %arg8[%c0_16, %c0_17] : memref<128x128xf32, #tpu.memory_space<vmem>>, vector<128x128xf32>
    %cst_18 = arith.constant dense<0.000000e+00> : vector<256x128xf32>
    %30 = tpu.matmul %28, %29, %cst_18 {dimension_numbers = #tpu.dot_dimension_numbers<[1], [0], [0], [1], [0, 0, 1, 1], [], []>} : vector<256x128xf32>, vector<128x128xf32>, vector<256x128xf32> -> vector<256x128xf32>
    %c0_19 = arith.constant 0 : index
    %c0_20 = arith.constant 0 : index
    %31 = vector.load %arg9[%c0_19, %c0_20] : memref<1x128xf32, #tpu.memory_space<vmem>>, vector<1x128xf32>
    %32 = vector.broadcast %31 : vector<1x128xf32> to vector<256x128xf32>
    %33 = arith.addf %30, %32 : vector<256x128xf32>
    %c0_21 = arith.constant 0 : index
    %c0_22 = arith.constant 0 : index
    %34 = vector.load %arg10[%c0_21, %c0_22] : memref<256x128xf32, #tpu.memory_space<vmem>>, vector<256x128xf32>
    tpu.vector_store %arg10[%c0_21, %c0_22], %33 {strides = array<i32>} : memref<256x128xf32, #tpu.memory_space<vmem>>, vector<256x128xf32>,
    return
  }
  func.func @transform_0(%arg0: i32) -> (i32, i32) {
    %c0_i32 = arith.constant 0 : i32
    %c0_i32_0 = arith.constant 0 : i32
    return %arg0, %c0_i32 : i32, i32
  }
  func.func @transform_1(%arg0: i32) -> (i32, i32) {
    %c0_i32 = arith.constant 0 : i32
    %c0_i32_0 = arith.constant 0 : i32
    return %arg0, %c0_i32 : i32, i32
  }
  func.func @transform_2(%arg0: i32) -> (i32, i32) {
    %c0_i32 = arith.constant 0 : i32
    %c0_i32_0 = arith.constant 0 : i32
    %c0_i32_1 = arith.constant 0 : i32
    return %c0_i32, %c0_i32_0 : i32, i32
  }
  func.func @transform_3(%arg0: i32) -> (i32, i32) {
    %c0_i32 = arith.constant 0 : i32
    %c0_i32_0 = arith.constant 0 : i32
    %c0_i32_1 = arith.constant 0 : i32
    return %c0_i32, %c0_i32_0 : i32, i32
  }
  func.func @transform_4(%arg0: i32) -> (i32, i32) {
    %c0_i32 = arith.constant 0 : i32
    %c0_i32_0 = arith.constant 0 : i32
    %c0_i32_1 = arith.constant 0 : i32
    return %c0_i32, %c0_i32_0 : i32, i32
  }
  func.func @transform_5(%arg0: i32) -> (i32, i32) {
    %c0_i32 = arith.constant 0 : i32
    %c0_i32_0 = arith.constant 0 : i32
    %c0_i32_1 = arith.constant 0 : i32
    return %c0_i32, %c0_i32_0 : i32, i32
  }
  func.func @transform_6(%arg0: i32) -> (i32, i32) {
    %c0_i32 = arith.constant 0 : i32
    %c0_i32_0 = arith.constant 0 : i32
    %c0_i32_1 = arith.constant 0 : i32
    return %c0_i32, %c0_i32_0 : i32, i32
  }
  func.func @transform_7(%arg0: i32) -> (i32, i32) {
    %c0_i32 = arith.constant 0 : i32
    %c0_i32_0 = arith.constant 0 : i32
    %c0_i32_1 = arith.constant 0 : i32
    return %c0_i32, %c0_i32_0 : i32, i32
  }
  func.func @transform_8(%arg0: i32) -> (i32, i32) {
    %c0_i32 = arith.constant 0 : i32
    %c0_i32_0 = arith.constant 0 : i32
    %c0_i32_1 = arith.constant 0 : i32
    return %c0_i32, %c0_i32_0 : i32, i32
  }
  func.func @transform_9(%arg0: i32) -> (i32, i32) {
    %c0_i32 = arith.constant 0 : i32
    %c0_i32_0 = arith.constant 0 : i32
    return %arg0, %c0_i32 : i32, i32
  }
}

</mosaic_0001>

<llo_original>
// kernel: mc_init_embedding2.1
$region0: #{mc_init_embedding2.1}
  #allocation0 [shape = 'u32[]', space=smem, size = 0x4, offset = 0x4, fixed_abs, tag = 'smem constant byte address 0x4 - core index']
  #allocation1 [shape = 'u32[72,128]{1,0:T(1,128)}', space=vmem, size = 0x9000, scoped, tag = 'internal scratch']
  %s0 = inlined_call_operand.vmem [shape: f32[1000,2], index: 0, kind: input, shape index: {}]
  %s1 = inlined_call_operand.vmem [shape: f32[1000,500], index: 1, kind: input, shape index: {}]
  %s2 = inlined_call_operand.vmem [shape: f32[2,128], index: 2, kind: input, shape index: {}]
  %s3 = inlined_call_operand.vmem [shape: f32[500,128], index: 3, kind: input, shape index: {}]
  %s4 = inlined_call_operand.vmem [shape: f32[1,128], index: 4, kind: input, shape index: {}]
  %s5 = inlined_call_operand.vmem [shape: f32[128,128], index: 5, kind: input, shape index: {}]
  %s6 = inlined_call_operand.vmem [shape: f32[1,128], index: 6, kind: input, shape index: {}]
  %s7 = inlined_call_operand.vmem [shape: f32[128,128], index: 7, kind: input, shape index: {}]
  %s8 = inlined_call_operand.vmem [shape: f32[1,128], index: 8, kind: input, shape index: {}]
  %s9 = inlined_call_operand.vmem [shape: f32[1000,128], index: 9, kind: output, shape index: {}]
  %s10 = sld [smem:[#allocation0]]
  $region117: #{mc_init_embedding2.1} parent=0
    _
  %s12 = ssub.s32 1, %s10
  %s13 = scalar_select 0, %s12, %s10
  $region1: #{mc_init_embedding2.1} parent=0
    #allocation2 [shape = 'u8[262144]{0}', space=vmem, size = 0x40000, scoped, tag = 'output window, operand 0']
    loop: start=0, step=1, limit=6
    $region2: #{mc_init_embedding2.1} parent=1 // loop_pre_header
      _
    $region3: #{mc_init_embedding2.1} parent=1 // loop_header
      %s15 = sphi 0, %s19
      %p16 = scmp.ge.s32.totalorder %s15, 6
      %s25 = sphi 0, %s27
      %s28 = sphi 0, %s25
      %s29 = sphi 0, %s28
      %s45 = sphi 0, %s29
      %s51 = sphi 0, %s53
      %s54 = sphi 0, %s51
      %s55 = sphi 0, %s54
      %s71 = sphi 0, %s55
      %s75 = sphi 0, %s75
      %s77 = sphi 0, %s75
      %s78 = sphi 0, %s77
      %s92 = sphi 0, %s78
      %s96 = sphi 0, %s96
      %s98 = sphi 0, %s96
      %s99 = sphi 0, %s98
      %s113 = sphi 0, %s99
      %s117 = sphi 0, %s117
      %s119 = sphi 0, %s117
      %s120 = sphi 0, %s119
      %s134 = sphi 0, %s120
      %s138 = sphi 0, %s138
      %s140 = sphi 0, %s138
      %s141 = sphi 0, %s140
      %s155 = sphi 0, %s141
      %s159 = sphi 0, %s159
      %s161 = sphi 0, %s159
      %s162 = sphi 0, %s161
      %s176 = sphi 0, %s162
      %s180 = sphi 0, %s180
      %s182 = sphi 0, %s180
      %s183 = sphi 0, %s182
      %s197 = sphi 0, %s183
      %s201 = sphi 0, %s201
      %s203 = sphi 0, %s201
      %s204 = sphi 0, %s203
      %s218 = sphi 0, %s204
      %s224 = sphi 0, %s226
      %s227 = sphi 0, %s224
      %s228 = sphi 0, %s227
      %s244 = sphi 0, %s228
    $region4: #{mc_init_embedding2.1} parent=1 // loop_header_branch
      %18 = sbr.rel (%p16) target = $region8
    $region5: #{mc_init_embedding2.1} parent=1 // loop_body
      %s20 = ssub.s32 %s15, 1
      %s21 = ssub.s32 %s15, 2
      %s22 = sadd.s32 %s15, 1
      %s23 = ssub.s32 %s15, %s22
      %p24 = scmp.eq.s32.totalorder %s23, 0
      %s26 = sadd.s32 %s25, 1
      %s27 = scalar_select %p24, %s25, %s26
      %p30 = pneg %p24
      %p31 = scmp.eq.s32.totalorder %s15, 3
      %p32 = por %p30, %p31
      %p33 = scmp.ne.s32.totalorder %s25, %s28
      %p34 = scmp.eq.s32.totalorder %s15, 0
      %p35 = por %p33, %p34
      %p36 = scmp.ne.s32.totalorder %s25, %s28
      %p37 = scmp.eq.s32.totalorder %s20, 3
      %p38 = por %p36, %p37
      %p39 = scmp.ne.s32.totalorder %s28, %s29
      %p40 = scmp.eq.s32.totalorder %s20, 0
      %p41 = por %p39, %p40
      %p42 = scmp.ne.s32.totalorder %s28, %s29
      %p43 = scmp.eq.s32.totalorder %s21, 3
      %p44 = por %p42, %p43
      %p46 = scmp.ne.s32.totalorder %s29, %s45
      %p47 = scmp.eq.s32.totalorder %s21, 0
      %p48 = por %p46, %p47
      %s49 = ssub.s32 %s15, %s22
      %p50 = scmp.eq.s32.totalorder %s49, 0
      %s52 = sadd.s32 %s51, 1
      %s53 = scalar_select %p50, %s51, %s52
      %p56 = pneg %p50
      %p57 = scmp.eq.s32.totalorder %s15, 3
      %p58 = por %p56, %p57
      %p59 = scmp.ne.s32.totalorder %s51, %s54
      %p60 = scmp.eq.s32.totalorder %s15, 0
      %p61 = por %p59, %p60
      %p62 = scmp.ne.s32.totalorder %s51, %s54
      %p63 = scmp.eq.s32.totalorder %s20, 3
      %p64 = por %p62, %p63
      %p65 = scmp.ne.s32.totalorder %s54, %s55
      %p66 = scmp.eq.s32.totalorder %s20, 0
      %p67 = por %p65, %p66
      %p68 = scmp.ne.s32.totalorder %s54, %s55
      %p69 = scmp.eq.s32.totalorder %s21, 3
      %p70 = por %p68, %p69
      %p72 = scmp.ne.s32.totalorder %s55, %s71
      %p73 = scmp.eq.s32.totalorder %s21, 0
      %p74 = por %p72, %p73
      %s76 = sadd.s32 %s75, 1
      %p79 = scmp.eq.s32.totalorder %s15, 3
      %p80 = scmp.ne.s32.totalorder %s75, %s77
      %p81 = scmp.eq.s32.totalorder %s15, 0
      %p82 = por %p80, %p81
      %p83 = scmp.ne.s32.totalorder %s75, %s77
      %p84 = scmp.eq.s32.totalorder %s20, 3
      %p85 = por %p83, %p84
      %p86 = scmp.ne.s32.totalorder %s77, %s78
      %p87 = scmp.eq.s32.totalorder %s20, 0
      %p88 = por %p86, %p87
      %p89 = scmp.ne.s32.totalorder %s77, %s78
      %p90 = scmp.eq.s32.totalorder %s21, 3
      %p91 = por %p89, %p90
      %p93 = scmp.ne.s32.totalorder %s78, %s92
      %p94 = scmp.eq.s32.totalorder %s21, 0
      %p95 = por %p93, %p94
      %s97 = sadd.s32 %s96, 1
      %p100 = scmp.eq.s32.totalorder %s15, 3
      %p101 = scmp.ne.s32.totalorder %s96, %s98
      %p102 = scmp.eq.s32.totalorder %s15, 0
      %p103 = por %p101, %p102
      %p104 = scmp.ne.s32.totalorder %s96, %s98
      %p105 = scmp.eq.s32.totalorder %s20, 3
      %p106 = por %p104, %p105
      %p107 = scmp.ne.s32.totalorder %s98, %s99
      %p108 = scmp.eq.s32.totalorder %s20, 0
      %p109 = por %p107, %p108
      %p110 = scmp.ne.s32.totalorder %s98, %s99
      %p111 = scmp.eq.s32.totalorder %s21, 3
      %p112 = por %p110, %p111
      %p114 = scmp.ne.s32.totalorder %s99, %s113
      %p115 = scmp.eq.s32.totalorder %s21, 0
      %p116 = por %p114, %p115
      %s118 = sadd.s32 %s117, 1
      %p121 = scmp.eq.s32.totalorder %s15, 3
      %p122 = scmp.ne.s32.totalorder %s117, %s119
      %p123 = scmp.eq.s32.totalorder %s15, 0
      %p124 = por %p122, %p123
      %p125 = scmp.ne.s32.totalorder %s117, %s119
      %p126 = scmp.eq.s32.totalorder %s20, 3
      %p127 = por %p125, %p126
      %p128 = scmp.ne.s32.totalorder %s119, %s120
      %p129 = scmp.eq.s32.totalorder %s20, 0
      %p130 = por %p128, %p129
      %p131 = scmp.ne.s32.totalorder %s119, %s120
      %p132 = scmp.eq.s32.totalorder %s21, 3
      %p133 = por %p131, %p132
      %p135 = scmp.ne.s32.totalorder %s120, %s134
      %p136 = scmp.eq.s32.totalorder %s21, 0
      %p137 = por %p135, %p136
      %s139 = sadd.s32 %s138, 1
      %p142 = scmp.eq.s32.totalorder %s15, 3
      %p143 = scmp.ne.s32.totalorder %s138, %s140
      %p144 = scmp.eq.s32.totalorder %s15, 0
      %p145 = por %p143, %p144
      %p146 = scmp.ne.s32.totalorder %s138, %s140
      %p147 = scmp.eq.s32.totalorder %s20, 3
      %p148 = por %p146, %p147
      %p149 = scmp.ne.s32.totalorder %s140, %s141
      %p150 = scmp.eq.s32.totalorder %s20, 0
      %p151 = por %p149, %p150
      %p152 = scmp.ne.s32.totalorder %s140, %s141
      %p153 = scmp.eq.s32.totalorder %s21, 3
      %p154 = por %p152, %p153
      %p156 = scmp.ne.s32.totalorder %s141, %s155
      %p157 = scmp.eq.s32.totalorder %s21, 0
      %p158 = por %p156, %p157
      %s160 = sadd.s32 %s159, 1
      %p163 = scmp.eq.s32.totalorder %s15, 3
      %p164 = scmp.ne.s32.totalorder %s159, %s161
      %p165 = scmp.eq.s32.totalorder %s15, 0
      %p166 = por %p164, %p165
      %p167 = scmp.ne.s32.totalorder %s159, %s161
      %p168 = scmp.eq.s32.totalorder %s20, 3
      %p169 = por %p167, %p168
      %p170 = scmp.ne.s32.totalorder %s161, %s162
      %p171 = scmp.eq.s32.totalorder %s20, 0
      %p172 = por %p170, %p171
      %p173 = scmp.ne.s32.totalorder %s161, %s162
      %p174 = scmp.eq.s32.totalorder %s21, 3
      %p175 = por %p173, %p174
      %p177 = scmp.ne.s32.totalorder %s162, %s176
      %p178 = scmp.eq.s32.totalorder %s21, 0
      %p179 = por %p177, %p178
      %s181 = sadd.s32 %s180, 1
      %p184 = scmp.eq.s32.totalorder %s15, 3
      %p185 = scmp.ne.s32.totalorder %s180, %s182
      %p186 = scmp.eq.s32.totalorder %s15, 0
      %p187 = por %p185, %p186
      %p188 = scmp.ne.s32.totalorder %s180, %s182
      %p189 = scmp.eq.s32.totalorder %s20, 3
      %p190 = por %p188, %p189
      %p191 = scmp.ne.s32.totalorder %s182, %s183
      %p192 = scmp.eq.s32.totalorder %s20, 0
      %p193 = por %p191, %p192
      %p194 = scmp.ne.s32.totalorder %s182, %s183
      %p195 = scmp.eq.s32.totalorder %s21, 3
      %p196 = por %p194, %p195
      %p198 = scmp.ne.s32.totalorder %s183, %s197
      %p199 = scmp.eq.s32.totalorder %s21, 0
      %p200 = por %p198, %p199
      %s202 = sadd.s32 %s201, 1
      %p205 = scmp.eq.s32.totalorder %s15, 3
      %p206 = scmp.ne.s32.totalorder %s201, %s203
      %p207 = scmp.eq.s32.totalorder %s15, 0
      %p208 = por %p206, %p207
      %p209 = scmp.ne.s32.totalorder %s201, %s203
      %p210 = scmp.eq.s32.totalorder %s20, 3
      %p211 = por %p209, %p210
      %p212 = scmp.ne.s32.totalorder %s203, %s204
      %p213 = scmp.eq.s32.totalorder %s20, 0
      %p214 = por %p212, %p213
      %p215 = scmp.ne.s32.totalorder %s203, %s204
      %p216 = scmp.eq.s32.totalorder %s21, 3
      %p217 = por %p215, %p216
      %p219 = scmp.ne.s32.totalorder %s204, %s218
      %p220 = scmp.eq.s32.totalorder %s21, 0
      %p221 = por %p219, %p220
      %s222 = ssub.s32 %s15, %s22
      %p223 = scmp.eq.s32.totalorder %s222, 0
      %s225 = sadd.s32 %s224, 1
      %s226 = scalar_select %p223, %s224, %s225
      %p229 = pneg %p223
      %p230 = scmp.eq.s32.totalorder %s15, 3
      %p231 = por %p229, %p230
      %p232 = scmp.ne.s32.totalorder %s224, %s227
      %p233 = scmp.eq.s32.totalorder %s15, 0
      %p234 = por %p232, %p233
      %p235 = scmp.ne.s32.totalorder %s224, %s227
      %p236 = scmp.eq.s32.totalorder %s20, 3
      %p237 = por %p235, %p236
      %p238 = scmp.ne.s32.totalorder %s227, %s228
      %p239 = scmp.eq.s32.totalorder %s20, 0
      %p240 = por %p238, %p239
      %p241 = scmp.ne.s32.totalorder %s227, %s228
      %p242 = scmp.eq.s32.totalorder %s21, 3
      %p243 = por %p241, %p242
      %p245 = scmp.ne.s32.totalorder %s228, %s244
      %p246 = scmp.eq.s32.totalorder %s21, 0
      %p247 = por %p245, %p246
      %p248 = scmp.le.s32.totalorder 1, %s15
      %p249 = scmp.lt.s32.totalorder %s15, 5
      %p250 = pnand %p248, %p249
      %p251 = pneg %p250
      // Predicated region
      $region9: #{mc_init_embedding2.1} parent=5 // pred_check
        _
      $region10: #{mc_init_embedding2.1} parent=5 // pred_check_branch
        %253 = sbr.rel (%p250) target = $region12
      $region11: #{mc_init_embedding2.1} parent=5 // pred_region
        %s254 = ssub.s32 %s15, 1
        // Predicated region
        $region13: #{mc_init_embedding2.1} parent=11 // pred_check
          %p255 = pneg %p88
        $region14: #{mc_init_embedding2.1} parent=11 // pred_check_branch
          %257 = sbr.rel (%p255) target = $region16
        $region15: #{mc_init_embedding2.1} parent=11 // pred_region
          _
        $region16: #{mc_init_embedding2.1} parent=11 // pred_fallthru
          _
        // Predicated region
        $region17: #{mc_init_embedding2.1} parent=11 // pred_check
          %p258 = pneg %p109
        $region18: #{mc_init_embedding2.1} parent=11 // pred_check_branch
          %260 = sbr.rel (%p258) target = $region20
        $region19: #{mc_init_embedding2.1} parent=11 // pred_region
          _
        $region20: #{mc_init_embedding2.1} parent=11 // pred_fallthru
          _
        // Predicated region
        $region21: #{mc_init_embedding2.1} parent=11 // pred_check
          %p261 = pneg %p130
        $region22: #{mc_init_embedding2.1} parent=11 // pred_check_branch
          %263 = sbr.rel (%p261) target = $region24
        $region23: #{mc_init_embedding2.1} parent=11 // pred_region
          _
        $region24: #{mc_init_embedding2.1} parent=11 // pred_fallthru
          _
        // Predicated region
        $region25: #{mc_init_embedding2.1} parent=11 // pred_check
          %p264 = pneg %p151
        $region26: #{mc_init_embedding2.1} parent=11 // pred_check_branch
          %266 = sbr.rel (%p264) target = $region28
        $region27: #{mc_init_embedding2.1} parent=11 // pred_region
          _
        $region28: #{mc_init_embedding2.1} parent=11 // pred_fallthru
          _
        // Predicated region
        $region29: #{mc_init_embedding2.1} parent=11 // pred_check
          %p267 = pneg %p172
        $region30: #{mc_init_embedding2.1} parent=11 // pred_check_branch
          %269 = sbr.rel (%p267) target = $region32
        $region31: #{mc_init_embedding2.1} parent=11 // pred_region
          _
        $region32: #{mc_init_embedding2.1} parent=11 // pred_fallthru
          _
        // Predicated region
        $region33: #{mc_init_embedding2.1} parent=11 // pred_check
          %p270 = pneg %p193
        $region34: #{mc_init_embedding2.1} parent=11 // pred_check_branch
          %272 = sbr.rel (%p270) target = $region36
        $region35: #{mc_init_embedding2.1} parent=11 // pred_region
          _
        $region36: #{mc_init_embedding2.1} parent=11 // pred_fallthru
          _
        // Predicated region
        $region37: #{mc_init_embedding2.1} parent=11 // pred_check
          %p273 = pneg %p214
        $region38: #{mc_init_embedding2.1} parent=11 // pred_check_branch
          %275 = sbr.rel (%p273) target = $region40
        $region39: #{mc_init_embedding2.1} parent=11 // pred_region
          _
        $region40: #{mc_init_embedding2.1} parent=11 // pred_fallthru
          _
      $region12: #{mc_init_embedding2.1} parent=5 // pred_fallthru
        _
      %p276 = scmp.lt.s32.totalorder %s15, 4
      // Predicated region
      $region41: #{mc_init_embedding2.1} parent=5 // pred_check
        %p277 = pneg %p276
      $region42: #{mc_init_embedding2.1} parent=5 // pred_check_branch
        %279 = sbr.rel (%p277) target = $region44
      $region43: #{mc_init_embedding2.1} parent=5 // pred_region
        // Predicated region
        $region45: #{mc_init_embedding2.1} parent=43 // pred_check
          %p280 = pneg %p35
        $region46: #{mc_init_embedding2.1} parent=43 // pred_check_branch
          %282 = sbr.rel (%p280) target = $region48
        $region47: #{mc_init_embedding2.1} parent=43 // pred_region
          %s283 = smul.u32 32, %s15
          %s284 = ssub.s32 125, %s283
          %p285 = scmp.lt.s32.totalorder %s284, 32
          %s286 = scalar_select %p285, %s284, 32
          %s287 = smul.u32 8, %s286
          %p288 = scmp.lt.s32.totalorder %s283, 124
          %s289 = scalar_select %p288, %s283, 124
          %s290 = smul.addr %s289, 8
          %s291 = scalar_lea.vmem %s0, %s290
          %s292 = smul.u32 32, %s15
          %s293 = ssub.s32 125, %s292
          %p294 = scmp.lt.s32.totalorder %s293, 32
          %s295 = scalar_select %p294, %s293, 32
          %s296 = smul.u32 8, %s295
        $region48: #{mc_init_embedding2.1} parent=43 // pred_fallthru
          _
        // Predicated region
        $region49: #{mc_init_embedding2.1} parent=43 // pred_check
          %p297 = pneg %p61
        $region50: #{mc_init_embedding2.1} parent=43 // pred_check_branch
          %299 = sbr.rel (%p297) target = $region52
        $region51: #{mc_init_embedding2.1} parent=43 // pred_region
          %s300 = smul.u32 32, %s15
          %s301 = ssub.s32 125, %s300
          %p302 = scmp.lt.s32.totalorder %s301, 32
          %s303 = scalar_select %p302, %s301, 32
          %s304 = smul.u32 8, %s303
          %s305 = smul.u32 %s304, 4
          %p306 = scmp.lt.s32.totalorder %s300, 124
          %s307 = scalar_select %p306, %s300, 124
          %s308 = smul.addr %s307, 4
          %s309 = smul.addr %s308, 8
          %s310 = scalar_lea.vmem %s1, %s309
          %s311 = smul.u32 32, %s15
          %s312 = ssub.s32 125, %s311
          %p313 = scmp.lt.s32.totalorder %s312, 32
          %s314 = scalar_select %p313, %s312, 32
          %s315 = smul.u32 8, %s314
          %s316 = smul.u32 %s315, 4
        $region52: #{mc_init_embedding2.1} parent=43 // pred_fallthru
          _
      $region44: #{mc_init_embedding2.1} parent=5 // pred_fallthru
        _
      %p317 = scmp.le.s32.totalorder 1, %s15
      %p318 = scmp.lt.s32.totalorder %s15, 5
      %p319 = pnand %p317, %p318
      %p320 = pneg %p319
      // Predicated region
      $region53: #{mc_init_embedding2.1} parent=5 // pred_check
        _
      $region54: #{mc_init_embedding2.1} parent=5 // pred_check_branch
        %322 = sbr.rel (%p319) target = $region56
      $region55: #{mc_init_embedding2.1} parent=5 // pred_region
        %s323 = ssub.s32 %s15, 1
        %s324 = smul.u32 32, %s20
        %s325 = ssub.s32 125, %s324
        %p326 = scmp.lt.s32.totalorder %s325, 32
        %s327 = scalar_select %p326, %s325, 32
        %s328 = smul.u32 8, %s327
        %p329 = scmp.lt.s32.totalorder %s324, 124
        %s330 = scalar_select %p329, %s324, 124
        %s331 = smul.addr %s330, 8
        %s332 = scalar_lea.vmem %s0, %s331
        %p333 = pneg %p41
        %p334 = pneg %p38
        %s335 = smul.u32 32, %s20
        %s336 = ssub.s32 125, %s335
        %p337 = scmp.lt.s32.totalorder %s336, 32
        %s338 = scalar_select %p337, %s336, 32
        %s339 = smul.u32 8, %s338
        %s340 = smul.u32 %s339, 4
        %p341 = scmp.lt.s32.totalorder %s335, 124
        %s342 = scalar_select %p341, %s335, 124
        %s343 = smul.addr %s342, 4
        %s344 = smul.addr %s343, 8
        %s345 = scalar_lea.vmem %s1, %s344
        %p346 = pneg %p67
        %p347 = pneg %p64
        %p348 = pneg %p88
        %p349 = pneg %p85
        %p350 = pneg %p109
        %p351 = pneg %p106
        %p352 = pneg %p130
        %p353 = pneg %p127
        %p354 = pneg %p151
        %p355 = pneg %p148
        %p356 = pneg %p172
        %p357 = pneg %p169
        %p358 = pneg %p193
        %p359 = pneg %p190
        %p360 = pneg %p214
        %p361 = pneg %p211
        %p362 = pneg %p240
        %p363 = pneg %p237
        %s364 = sand.u32 %s227, 1
        %s365 = sand.u32 %s227, 1
        %s366 = smul.addr %s365, 256
        %s367 = scalar_lea.vmem [#allocation2], %s366
        %s368 = smul.u32 32, %s20
        %s369 = ssub.s32 125, %s368
        %p370 = scmp.lt.s32.totalorder %s369, 32
        %s371 = scalar_select %p370, %s369, 32
        %s372 = smul.u32 8, %s371
        %p373 = scmp.lt.s32.totalorder %s368, 124
        %s374 = scalar_select %p373, %s368, 124
        %s375 = smul.addr %s374, 8
        %s376 = scalar_lea.vmem %s0, %s375
        %s377 = smul.u32 32, %s20
        %s378 = ssub.s32 125, %s377
        %p379 = scmp.lt.s32.totalorder %s378, 32
        %s380 = scalar_select %p379, %s378, 32
        %s381 = smul.u32 8, %s380
        %s382 = smul.u32 32, %s20
        %s383 = ssub.s32 125, %s382
        %p384 = scmp.lt.s32.totalorder %s383, 32
        %s385 = scalar_select %p384, %s383, 32
        %s386 = smul.u32 8, %s385
        %s387 = smul.u32 %s386, 4
        %p388 = scmp.lt.s32.totalorder %s382, 124
        %s389 = scalar_select %p388, %s382, 124
        %s390 = smul.addr %s389, 4
        %s391 = smul.addr %s390, 8
        %s392 = scalar_lea.vmem %s1, %s391
        %s393 = smul.u32 32, %s20
        %s394 = ssub.s32 125, %s393
        %p395 = scmp.lt.s32.totalorder %s394, 32
        %s396 = scalar_select %p395, %s394, 32
        %s397 = smul.u32 8, %s396
        %s398 = smul.u32 %s397, 4
        %s399 = smul.u32 32, %s20
        %s400 = ssub.s32 125, %s399
        %p401 = scmp.lt.s32.totalorder %s400, 32
        %s402 = scalar_select %p401, %s400, 32
        %s403 = smul.u32 8, %s402
        %v404 = vld [vmem:[%s392] sm:$0xff]
        %v405 = vld [vmem:[%s392 + $0x8] sm:$0xff]
        %v406 = vld [vmem:[%s392 + $0x10] sm:$0xff]
        %v407 = vld [vmem:[%s392 + $0x18] sm:$0xff]
        %v408 = vld [vmem:[%s392 + $0x20] sm:$0xff]
        %v409 = vld [vmem:[%s392 + $0x28] sm:$0xff]
        %v410 = vld [vmem:[%s392 + $0x30] sm:$0xff]
        %v411 = vld [vmem:[%s392 + $0x38] sm:$0xff]
        %v412 = vld [vmem:[%s392 + $0x40] sm:$0xff]
        %v413 = vld [vmem:[%s392 + $0x48] sm:$0xff]
        %v414 = vld [vmem:[%s392 + $0x50] sm:$0xff]
        %v415 = vld [vmem:[%s392 + $0x58] sm:$0xff]
        %v416 = vld [vmem:[%s392 + $0x60] sm:$0xff]
        %v417 = vld [vmem:[%s392 + $0x68] sm:$0xff]
        %v418 = vld [vmem:[%s392 + $0x70] sm:$0xff]
        %v419 = vld [vmem:[%s392 + $0x78] sm:$0xff]
        %v420 = vld [vmem:[%s392 + $0x80] sm:$0xff]
        %v421 = vld [vmem:[%s392 + $0x88] sm:$0xff]
        %v422 = vld [vmem:[%s392 + $0x90] sm:$0xff]
        %v423 = vld [vmem:[%s392 + $0x98] sm:$0xff]
        %v424 = vld [vmem:[%s392 + $0xa0] sm:$0xff]
        %v425 = vld [vmem:[%s392 + $0xa8] sm:$0xff]
        %v426 = vld [vmem:[%s392 + $0xb0] sm:$0xff]
        %v427 = vld [vmem:[%s392 + $0xb8] sm:$0xff]
        %v428 = vld [vmem:[%s392 + $0xc0] sm:$0xff]
        %v429 = vld [vmem:[%s392 + $0xc8] sm:$0xff]
        %v430 = vld [vmem:[%s392 + $0xd0] sm:$0xff]
        %v431 = vld [vmem:[%s392 + $0xd8] sm:$0xff]
        %v432 = vld [vmem:[%s392 + $0xe0] sm:$0xff]
        %v433 = vld [vmem:[%s392 + $0xe8] sm:$0xff]
        %v434 = vld [vmem:[%s392 + $0xf0] sm:$0xff]
        %v435 = vld [vmem:[%s392 + $0xf8] sm:$0xff]
        %v436 = vld [vmem:[%s392 + $0x100] sm:$0xff]
        %v437 = vld [vmem:[%s392 + $0x108] sm:$0xff]
        %v438 = vld [vmem:[%s392 + $0x110] sm:$0xff]
        %v439 = vld [vmem:[%s392 + $0x118] sm:$0xff]
        %v440 = vld [vmem:[%s392 + $0x120] sm:$0xff]
        %v441 = vld [vmem:[%s392 + $0x128] sm:$0xff]
        %v442 = vld [vmem:[%s392 + $0x130] sm:$0xff]
        %v443 = vld [vmem:[%s392 + $0x138] sm:$0xff]
        %v444 = vld [vmem:[%s392 + $0x140] sm:$0xff]
        %v445 = vld [vmem:[%s392 + $0x148] sm:$0xff]
        %v446 = vld [vmem:[%s392 + $0x150] sm:$0xff]
        %v447 = vld [vmem:[%s392 + $0x158] sm:$0xff]
        %v448 = vld [vmem:[%s392 + $0x160] sm:$0xff]
        %v449 = vld [vmem:[%s392 + $0x168] sm:$0xff]
        %v450 = vld [vmem:[%s392 + $0x170] sm:$0xff]
        %v451 = vld [vmem:[%s392 + $0x178] sm:$0xff]
        %v452 = vld [vmem:[%s392 + $0x180] sm:$0xff]
        %v453 = vld [vmem:[%s392 + $0x188] sm:$0xff]
        %v454 = vld [vmem:[%s392 + $0x190] sm:$0xff]
        %v455 = vld [vmem:[%s392 + $0x198] sm:$0xff]
        %v456 = vld [vmem:[%s392 + $0x1a0] sm:$0xff]
        %v457 = vld [vmem:[%s392 + $0x1a8] sm:$0xff]
        %v458 = vld [vmem:[%s392 + $0x1b0] sm:$0xff]
        %v459 = vld [vmem:[%s392 + $0x1b8] sm:$0xff]
        %v460 = vld [vmem:[%s392 + $0x1c0] sm:$0xff]
        %v461 = vld [vmem:[%s392 + $0x1c8] sm:$0xff]
        %v462 = vld [vmem:[%s392 + $0x1d0] sm:$0xff]
        %v463 = vld [vmem:[%s392 + $0x1d8] sm:$0xff]
        %v464 = vld [vmem:[%s392 + $0x1e0] sm:$0xff]
        %v465 = vld [vmem:[%s392 + $0x1e8] sm:$0xff]
        %v466 = vld [vmem:[%s392 + $0x1f0] sm:$0xff]
        %v467 = vld [vmem:[%s392 + $0x1f8] sm:$0xff]
        %v468 = vld [vmem:[%s392 + $0x200] sm:$0xff]
        %v469 = vld [vmem:[%s392 + $0x208] sm:$0xff]
        %v470 = vld [vmem:[%s392 + $0x210] sm:$0xff]
        %v471 = vld [vmem:[%s392 + $0x218] sm:$0xff]
        %v472 = vld [vmem:[%s392 + $0x220] sm:$0xff]
        %v473 = vld [vmem:[%s392 + $0x228] sm:$0xff]
        %v474 = vld [vmem:[%s392 + $0x230] sm:$0xff]
        %v475 = vld [vmem:[%s392 + $0x238] sm:$0xff]
        %v476 = vld [vmem:[%s392 + $0x240] sm:$0xff]
        %v477 = vld [vmem:[%s392 + $0x248] sm:$0xff]
        %v478 = vld [vmem:[%s392 + $0x250] sm:$0xff]
        %v479 = vld [vmem:[%s392 + $0x258] sm:$0xff]
        %v480 = vld [vmem:[%s392 + $0x260] sm:$0xff]
        %v481 = vld [vmem:[%s392 + $0x268] sm:$0xff]
        %v482 = vld [vmem:[%s392 + $0x270] sm:$0xff]
        %v483 = vld [vmem:[%s392 + $0x278] sm:$0xff]
        %v484 = vld [vmem:[%s392 + $0x280] sm:$0xff]
        %v485 = vld [vmem:[%s392 + $0x288] sm:$0xff]
        %v486 = vld [vmem:[%s392 + $0x290] sm:$0xff]
        %v487 = vld [vmem:[%s392 + $0x298] sm:$0xff]
        %v488 = vld [vmem:[%s392 + $0x2a0] sm:$0xff]
        %v489 = vld [vmem:[%s392 + $0x2a8] sm:$0xff]
        %v490 = vld [vmem:[%s392 + $0x2b0] sm:$0xff]
        %v491 = vld [vmem:[%s392 + $0x2b8] sm:$0xff]
        %v492 = vld [vmem:[%s392 + $0x2c0] sm:$0xff]
        %v493 = vld [vmem:[%s392 + $0x2c8] sm:$0xff]
        %v494 = vld [vmem:[%s392 + $0x2d0] sm:$0xff]
        %v495 = vld [vmem:[%s392 + $0x2d8] sm:$0xff]
        %v496 = vld [vmem:[%s392 + $0x2e0] sm:$0xff]
        %v497 = vld [vmem:[%s392 + $0x2e8] sm:$0xff]
        %v498 = vld [vmem:[%s392 + $0x2f0] sm:$0xff]
        %v499 = vld [vmem:[%s392 + $0x2f8] sm:$0xff]
        %v500 = vld [vmem:[%s392 + $0x300] sm:$0xff]
        %v501 = vld [vmem:[%s392 + $0x308] sm:$0xff]
        %v502 = vld [vmem:[%s392 + $0x310] sm:$0xff]
        %v503 = vld [vmem:[%s392 + $0x318] sm:$0xff]
        %v504 = vld [vmem:[%s392 + $0x320] sm:$0xff]
        %v505 = vld [vmem:[%s392 + $0x328] sm:$0xff]
        %v506 = vld [vmem:[%s392 + $0x330] sm:$0xff]
        %v507 = vld [vmem:[%s392 + $0x338] sm:$0xff]
        %v508 = vld [vmem:[%s392 + $0x340] sm:$0xff]
        %v509 = vld [vmem:[%s392 + $0x348] sm:$0xff]
        %v510 = vld [vmem:[%s392 + $0x350] sm:$0xff]
        %v511 = vld [vmem:[%s392 + $0x358] sm:$0xff]
        %v512 = vld [vmem:[%s392 + $0x360] sm:$0xff]
        %v513 = vld [vmem:[%s392 + $0x368] sm:$0xff]
        %v514 = vld [vmem:[%s392 + $0x370] sm:$0xff]
        %v515 = vld [vmem:[%s392 + $0x378] sm:$0xff]
        %v516 = vld [vmem:[%s392 + $0x380] sm:$0xff]
        %v517 = vld [vmem:[%s392 + $0x388] sm:$0xff]
        %v518 = vld [vmem:[%s392 + $0x390] sm:$0xff]
        %v519 = vld [vmem:[%s392 + $0x398] sm:$0xff]
        %v520 = vld [vmem:[%s392 + $0x3a0] sm:$0xff]
        %v521 = vld [vmem:[%s392 + $0x3a8] sm:$0xff]
        %v522 = vld [vmem:[%s392 + $0x3b0] sm:$0xff]
        %v523 = vld [vmem:[%s392 + $0x3b8] sm:$0xff]
        %v524 = vld [vmem:[%s392 + $0x3c0] sm:$0xff]
        %v525 = vld [vmem:[%s392 + $0x3c8] sm:$0xff]
        %v526 = vld [vmem:[%s392 + $0x3d0] sm:$0xff]
        %v527 = vld [vmem:[%s392 + $0x3d8] sm:$0xff]
        %v528 = vld [vmem:[%s392 + $0x3e0] sm:$0xff]
        %v529 = vld [vmem:[%s392 + $0x3e8] sm:$0xff]
        %v530 = vld [vmem:[%s392 + $0x3f0] sm:$0xff]
        %v531 = vld [vmem:[%s392 + $0x3f8] sm:$0xff]
        %v532 = vld [vmem:[%s3] sm:$0xff]
        %v533 = vld [vmem:[%s3 + $0x8] sm:$0xff]
        %v534 = vld [vmem:[%s3 + $0x10] sm:$0xff]
        %v535 = vld [vmem:[%s3 + $0x18] sm:$0xff]
        %v536 = vld [vmem:[%s3 + $0x20] sm:$0xff]
        %v537 = vld [vmem:[%s3 + $0x28] sm:$0xff]
        %v538 = vld [vmem:[%s3 + $0x30] sm:$0xff]
        %v539 = vld [vmem:[%s3 + $0x38] sm:$0xff]
        %v540 = vld [vmem:[%s3 + $0x40] sm:$0xff]
        %v541 = vld [vmem:[%s3 + $0x48] sm:$0xff]
        %v542 = vld [vmem:[%s3 + $0x50] sm:$0xff]
        %v543 = vld [vmem:[%s3 + $0x58] sm:$0xff]
        %v544 = vld [vmem:[%s3 + $0x60] sm:$0xff]
        %v545 = vld [vmem:[%s3 + $0x68] sm:$0xff]
        %v546 = vld [vmem:[%s3 + $0x70] sm:$0xff]
        %v547 = vld [vmem:[%s3 + $0x78] sm:$0xff]
        %v548 = vld [vmem:[%s3 + $0x80] sm:$0xff]
        %v549 = vld [vmem:[%s3 + $0x88] sm:$0xff]
        %v550 = vld [vmem:[%s3 + $0x90] sm:$0xff]
        %v551 = vld [vmem:[%s3 + $0x98] sm:$0xff]
        %v552 = vld [vmem:[%s3 + $0xa0] sm:$0xff]
        %v553 = vld [vmem:[%s3 + $0xa8] sm:$0xff]
        %v554 = vld [vmem:[%s3 + $0xb0] sm:$0xff]
        %v555 = vld [vmem:[%s3 + $0xb8] sm:$0xff]
        %v556 = vld [vmem:[%s3 + $0xc0] sm:$0xff]
        %v557 = vld [vmem:[%s3 + $0xc8] sm:$0xff]
        %v558 = vld [vmem:[%s3 + $0xd0] sm:$0xff]
        %v559 = vld [vmem:[%s3 + $0xd8] sm:$0xff]
        %v560 = vld [vmem:[%s3 + $0xe0] sm:$0xff]
        %v561 = vld [vmem:[%s3 + $0xe8] sm:$0xff]
        %v562 = vld [vmem:[%s3 + $0xf0] sm:$0xff]
        %v563 = vld [vmem:[%s3 + $0xf8] sm:$0xff]
        %v564 = vld [vmem:[%s3 + $0x100] sm:$0xff]
        %v565 = vld [vmem:[%s3 + $0x108] sm:$0xff]
        %v566 = vld [vmem:[%s3 + $0x110] sm:$0xff]
        %v567 = vld [vmem:[%s3 + $0x118] sm:$0xff]
        %v568 = vld [vmem:[%s3 + $0x120] sm:$0xff]
        %v569 = vld [vmem:[%s3 + $0x128] sm:$0xff]
        %v570 = vld [vmem:[%s3 + $0x130] sm:$0xff]
        %v571 = vld [vmem:[%s3 + $0x138] sm:$0xff]
        %v572 = vld [vmem:[%s3 + $0x140] sm:$0xff]
        %v573 = vld [vmem:[%s3 + $0x148] sm:$0xff]
        %v574 = vld [vmem:[%s3 + $0x150] sm:$0xff]
        %v575 = vld [vmem:[%s3 + $0x158] sm:$0xff]
        %v576 = vld [vmem:[%s3 + $0x160] sm:$0xff]
        %v577 = vld [vmem:[%s3 + $0x168] sm:$0xff]
        %v578 = vld [vmem:[%s3 + $0x170] sm:$0xff]
        %v579 = vld [vmem:[%s3 + $0x178] sm:$0xff]
        %v580 = vld [vmem:[%s3 + $0x180] sm:$0xff]
        %v581 = vld [vmem:[%s3 + $0x188] sm:$0xff]
        %v582 = vld [vmem:[%s3 + $0x190] sm:$0xff]
        %v583 = vld [vmem:[%s3 + $0x198] sm:$0xff]
        %v584 = vld [vmem:[%s3 + $0x1a0] sm:$0xff]
        %v585 = vld [vmem:[%s3 + $0x1a8] sm:$0xff]
        %v586 = vld [vmem:[%s3 + $0x1b0] sm:$0xff]
        %v587 = vld [vmem:[%s3 + $0x1b8] sm:$0xff]
        %v588 = vld [vmem:[%s3 + $0x1c0] sm:$0xff]
        %v589 = vld [vmem:[%s3 + $0x1c8] sm:$0xff]
        %v590 = vld [vmem:[%s3 + $0x1d0] sm:$0xff]
        %v591 = vld [vmem:[%s3 + $0x1d8] sm:$0xff]
        %v592 = vld [vmem:[%s3 + $0x1e0] sm:$0xff]
        %v593 = vld [vmem:[%s3 + $0x1e8] sm:$0xff]
        %v594 = vld [vmem:[%s3 + $0x1f0] sm:$0xf]
        %v595 = vld [vmem:[%s4] sm:$0x1]
        %v597 = vperm.slane %v595, 0
        %vm599 = vcmask 949248
        %v601 = vsel %vm599, %v407, 0
        %v604 = vsel %vm599, %v411, 0
        %v607 = vsel %vm599, %v415, 0
        %v610 = vsel %vm599, %v419, 0
        %v613 = vsel %vm599, %v423, 0
        %v616 = vsel %vm599, %v427, 0
        %v619 = vsel %vm599, %v431, 0
        %v622 = vsel %vm599, %v435, 0
        %v625 = vsel %vm599, %v439, 0
        %v628 = vsel %vm599, %v443, 0
        %v631 = vsel %vm599, %v447, 0
        %v634 = vsel %vm599, %v451, 0
        %v637 = vsel %vm599, %v455, 0
        %v640 = vsel %vm599, %v459, 0
        %v643 = vsel %vm599, %v463, 0
        %v646 = vsel %vm599, %v467, 0
        %v649 = vsel %vm599, %v471, 0
        %v652 = vsel %vm599, %v475, 0
        %v655 = vsel %vm599, %v479, 0
        %v658 = vsel %vm599, %v483, 0
        %v661 = vsel %vm599, %v487, 0
        %v664 = vsel %vm599, %v491, 0
        %v667 = vsel %vm599, %v495, 0
        %v670 = vsel %vm599, %v499, 0
        %v673 = vsel %vm599, %v503, 0
        %v676 = vsel %vm599, %v507, 0
        %v679 = vsel %vm599, %v511, 0
        %v682 = vsel %vm599, %v515, 0
        %v685 = vsel %vm599, %v519, 0
        %v688 = vsel %vm599, %v523, 0
        %v691 = vsel %vm599, %v527, 0
        %v694 = vsel %vm599, %v531, 0
        %vm696 = vcmask 1043456
        %v698 = vsel %vm696, %v594, 0
        %700 = vmatpush.msra.mxu0 %v547
        %701 = vmatpush.msra.mxu0 %v546
        %702 = vmatpush.msra.mxu0 %v545
        %703 = vmatpush.msra.mxu0 %v544
        %704 = vmatpush.msra.mxu0 %v543
        %705 = vmatpush.msra.mxu0 %v542
        %706 = vmatpush.msra.mxu0 %v541
        %707 = vmatpush.msra.mxu0 %v540
        %708 = vmatpush.msra.mxu0 %v539
        %709 = vmatpush.msra.mxu0 %v538
        %710 = vmatpush.msra.mxu0 %v537
        %711 = vmatpush.msra.mxu0 %v536
        %712 = vmatpush.msra.mxu0 %v535
        %713 = vmatpush.msra.mxu0 %v534
        %714 = vmatpush.msra.mxu0 %v533
        %715 = vmatpush.msra.mxu0 %v532
        %716 = vmatmul.f32.gmra.mxu0 %v404
        %v717 = vpop.f32.mrf.mxu0
        %v718 = vadd.f32 %v597, %v717
        %719 = vmatmul.f32.gmra.mxu0 %v408
        %v720 = vpop.f32.mrf.mxu0
        %v721 = vadd.f32 %v597, %v720
        %722 = vmatmul.f32.gmra.mxu0 %v412
        %v723 = vpop.f32.mrf.mxu0
        %v724 = vadd.f32 %v597, %v723
        %725 = vmatmul.f32.gmra.mxu0 %v416
        %v726 = vpop.f32.mrf.mxu0
        %v727 = vadd.f32 %v597, %v726
        %728 = vmatmul.f32.gmra.mxu0 %v420
        %v729 = vpop.f32.mrf.mxu0
        %v730 = vadd.f32 %v597, %v729
        %731 = vmatmul.f32.gmra.mxu0 %v424
        %v732 = vpop.f32.mrf.mxu0
        %v733 = vadd.f32 %v597, %v732
        %734 = vmatmul.f32.gmra.mxu0 %v428
        %v735 = vpop.f32.mrf.mxu0
        %v736 = vadd.f32 %v597, %v735
        %737 = vmatmul.f32.gmra.mxu0 %v432
        %v738 = vpop.f32.mrf.mxu0
        %v739 = vadd.f32 %v597, %v738
        %740 = vmatmul.f32.gmra.mxu0 %v436
        %v741 = vpop.f32.mrf.mxu0
        %v742 = vadd.f32 %v597, %v741
        %743 = vmatmul.f32.gmra.mxu0 %v440
        %v744 = vpop.f32.mrf.mxu0
        %v745 = vadd.f32 %v597, %v744
        %746 = vmatmul.f32.gmra.mxu0 %v444
        %v747 = vpop.f32.mrf.mxu0
        %v748 = vadd.f32 %v597, %v747
        %749 = vmatmul.f32.gmra.mxu0 %v448
        %v750 = vpop.f32.mrf.mxu0
        %v751 = vadd.f32 %v597, %v750
        %752 = vmatmul.f32.gmra.mxu0 %v452
        %v753 = vpop.f32.mrf.mxu0
        %v754 = vadd.f32 %v597, %v753
        %755 = vmatmul.f32.gmra.mxu0 %v456
        %v756 = vpop.f32.mrf.mxu0
        %v757 = vadd.f32 %v597, %v756
        %758 = vmatmul.f32.gmra.mxu0 %v460
        %v759 = vpop.f32.mrf.mxu0
        %v760 = vadd.f32 %v597, %v759
        %761 = vmatmul.f32.gmra.mxu0 %v464
        %v762 = vpop.f32.mrf.mxu0
        %v763 = vadd.f32 %v597, %v762
        %764 = vmatmul.f32.gmra.mxu0 %v468
        %v765 = vpop.f32.mrf.mxu0
        %v766 = vadd.f32 %v597, %v765
        %767 = vmatmul.f32.gmra.mxu0 %v472
        %v768 = vpop.f32.mrf.mxu0
        %v769 = vadd.f32 %v597, %v768
        %770 = vmatmul.f32.gmra.mxu0 %v476
        %v771 = vpop.f32.mrf.mxu0
        %v772 = vadd.f32 %v597, %v771
        %773 = vmatmul.f32.gmra.mxu0 %v480
        %v774 = vpop.f32.mrf.mxu0
        %v775 = vadd.f32 %v597, %v774
        %776 = vmatmul.f32.gmra.mxu0 %v484
        %v777 = vpop.f32.mrf.mxu0
        %v778 = vadd.f32 %v597, %v777
        %779 = vmatmul.f32.gmra.mxu0 %v488
        %v780 = vpop.f32.mrf.mxu0
        %v781 = vadd.f32 %v597, %v780
        %782 = vmatmul.f32.gmra.mxu0 %v492
        %v783 = vpop.f32.mrf.mxu0
        %v784 = vadd.f32 %v597, %v783
        %785 = vmatmul.f32.gmra.mxu0 %v496
        %v786 = vpop.f32.mrf.mxu0
        %v787 = vadd.f32 %v597, %v786
        %788 = vmatmul.f32.gmra.mxu0 %v500
        %v789 = vpop.f32.mrf.mxu0
        %v790 = vadd.f32 %v597, %v789
        %791 = vmatmul.f32.gmra.mxu0 %v504
        %v792 = vpop.f32.mrf.mxu0
        %v793 = vadd.f32 %v597, %v792
        %794 = vmatmul.f32.gmra.mxu0 %v508
        %v795 = vpop.f32.mrf.mxu0
        %v796 = vadd.f32 %v597, %v795
        %797 = vmatmul.f32.gmra.mxu0 %v512
        %v798 = vpop.f32.mrf.mxu0
        %v799 = vadd.f32 %v597, %v798
        %800 = vmatmul.f32.gmra.mxu0 %v516
        %v801 = vpop.f32.mrf.mxu0
        %v802 = vadd.f32 %v597, %v801
        %803 = vmatmul.f32.gmra.mxu0 %v520
        %v804 = vpop.f32.mrf.mxu0
        %v805 = vadd.f32 %v597, %v804
        %806 = vmatmul.f32.gmra.mxu0 %v524
        %v807 = vpop.f32.mrf.mxu0
        %v808 = vadd.f32 %v597, %v807
        %809 = vmatmul.f32.gmra.mxu0 %v528
        %v810 = vpop.f32.mrf.mxu0
        %v811 = vadd.f32 %v597, %v810
        %812 = vdwg.mxu0
        %813 = vmatpush.msra.mxu0 %v563
        %814 = vmatpush.msra.mxu0 %v562
        %815 = vmatpush.msra.mxu0 %v561
        %816 = vmatpush.msra.mxu0 %v560
        %817 = vmatpush.msra.mxu0 %v559
        %818 = vmatpush.msra.mxu0 %v558
        %819 = vmatpush.msra.mxu0 %v557
        %820 = vmatpush.msra.mxu0 %v556
        %821 = vmatpush.msra.mxu0 %v555
        %822 = vmatpush.msra.mxu0 %v554
        %823 = vmatpush.msra.mxu0 %v553
        %824 = vmatpush.msra.mxu0 %v552
        %825 = vmatpush.msra.mxu0 %v551
        %826 = vmatpush.msra.mxu0 %v550
        %827 = vmatpush.msra.mxu0 %v549
        %828 = vmatpush.msra.mxu0 %v548
        %829 = vmatmul.f32.gmra.mxu0 %v405
        %v830 = vpop.f32.mrf.mxu0
        %v831 = vadd.f32 %v718, %v830
        %832 = vmatmul.f32.gmra.mxu0 %v409
        %v833 = vpop.f32.mrf.mxu0
        %v834 = vadd.f32 %v721, %v833
        %835 = vmatmul.f32.gmra.mxu0 %v413
        %v836 = vpop.f32.mrf.mxu0
        %v837 = vadd.f32 %v724, %v836
        %838 = vmatmul.f32.gmra.mxu0 %v417
        %v839 = vpop.f32.mrf.mxu0
        %v840 = vadd.f32 %v727, %v839
        %841 = vmatmul.f32.gmra.mxu0 %v421
        %v842 = vpop.f32.mrf.mxu0
        %v843 = vadd.f32 %v730, %v842
        %844 = vmatmul.f32.gmra.mxu0 %v425
        %v845 = vpop.f32.mrf.mxu0
        %v846 = vadd.f32 %v733, %v845
        %847 = vmatmul.f32.gmra.mxu0 %v429
        %v848 = vpop.f32.mrf.mxu0
        %v849 = vadd.f32 %v736, %v848
        %850 = vmatmul.f32.gmra.mxu0 %v433
        %v851 = vpop.f32.mrf.mxu0
        %v852 = vadd.f32 %v739, %v851
        %853 = vmatmul.f32.gmra.mxu0 %v437
        %v854 = vpop.f32.mrf.mxu0
        %v855 = vadd.f32 %v742, %v854
        %856 = vmatmul.f32.gmra.mxu0 %v441
        %v857 = vpop.f32.mrf.mxu0
        %v858 = vadd.f32 %v745, %v857
        %859 = vmatmul.f32.gmra.mxu0 %v445
        %v860 = vpop.f32.mrf.mxu0
        %v861 = vadd.f32 %v748, %v860
        %862 = vmatmul.f32.gmra.mxu0 %v449
        %v863 = vpop.f32.mrf.mxu0
        %v864 = vadd.f32 %v751, %v863
        %865 = vmatmul.f32.gmra.mxu0 %v453
        %v866 = vpop.f32.mrf.mxu0
        %v867 = vadd.f32 %v754, %v866
        %868 = vmatmul.f32.gmra.mxu0 %v457
        %v869 = vpop.f32.mrf.mxu0
        %v870 = vadd.f32 %v757, %v869
        %871 = vmatmul.f32.gmra.mxu0 %v461
        %v872 = vpop.f32.mrf.mxu0
        %v873 = vadd.f32 %v760, %v872
        %874 = vmatmul.f32.gmra.mxu0 %v465
        %v875 = vpop.f32.mrf.mxu0
        %v876 = vadd.f32 %v763, %v875
        %877 = vmatmul.f32.gmra.mxu0 %v469
        %v878 = vpop.f32.mrf.mxu0
        %v879 = vadd.f32 %v766, %v878
        %880 = vmatmul.f32.gmra.mxu0 %v473
        %v881 = vpop.f32.mrf.mxu0
        %v882 = vadd.f32 %v769, %v881
        %883 = vmatmul.f32.gmra.mxu0 %v477
        %v884 = vpop.f32.mrf.mxu0
        %v885 = vadd.f32 %v772, %v884
        %886 = vmatmul.f32.gmra.mxu0 %v481
        %v887 = vpop.f32.mrf.mxu0
        %v888 = vadd.f32 %v775, %v887
        %889 = vmatmul.f32.gmra.mxu0 %v485
        %v890 = vpop.f32.mrf.mxu0
        %v891 = vadd.f32 %v778, %v890
        %892 = vmatmul.f32.gmra.mxu0 %v489
        %v893 = vpop.f32.mrf.mxu0
        %v894 = vadd.f32 %v781, %v893
        %895 = vmatmul.f32.gmra.mxu0 %v493
        %v896 = vpop.f32.mrf.mxu0
        %v897 = vadd.f32 %v784, %v896
        %898 = vmatmul.f32.gmra.mxu0 %v497
        %v899 = vpop.f32.mrf.mxu0
        %v900 = vadd.f32 %v787, %v899
        %901 = vmatmul.f32.gmra.mxu0 %v501
        %v902 = vpop.f32.mrf.mxu0
        %v903 = vadd.f32 %v790, %v902
        %904 = vmatmul.f32.gmra.mxu0 %v505
        %v905 = vpop.f32.mrf.mxu0
        %v906 = vadd.f32 %v793, %v905
        %907 = vmatmul.f32.gmra.mxu0 %v509
        %v908 = vpop.f32.mrf.mxu0
        %v909 = vadd.f32 %v796, %v908
        %910 = vmatmul.f32.gmra.mxu0 %v513
        %v911 = vpop.f32.mrf.mxu0
        %v912 = vadd.f32 %v799, %v911
        %913 = vmatmul.f32.gmra.mxu0 %v517
        %v914 = vpop.f32.mrf.mxu0
        %v915 = vadd.f32 %v802, %v914
        %916 = vmatmul.f32.gmra.mxu0 %v521
        %v917 = vpop.f32.mrf.mxu0
        %v918 = vadd.f32 %v805, %v917
        %919 = vmatmul.f32.gmra.mxu0 %v525
        %v920 = vpop.f32.mrf.mxu0
        %v921 = vadd.f32 %v808, %v920
        %922 = vmatmul.f32.gmra.mxu0 %v529
        %v923 = vpop.f32.mrf.mxu0
        %v924 = vadd.f32 %v811, %v923
        %925 = vdwg.mxu0
        %926 = vmatpush.msra.mxu0 %v579
        %927 = vmatpush.msra.mxu0 %v578
        %928 = vmatpush.msra.mxu0 %v577
        %929 = vmatpush.msra.mxu0 %v576
        %930 = vmatpush.msra.mxu0 %v575
        %931 = vmatpush.msra.mxu0 %v574
        %932 = vmatpush.msra.mxu0 %v573
        %933 = vmatpush.msra.mxu0 %v572
        %934 = vmatpush.msra.mxu0 %v571
        %935 = vmatpush.msra.mxu0 %v570
        %936 = vmatpush.msra.mxu0 %v569
        %937 = vmatpush.msra.mxu0 %v568
        %938 = vmatpush.msra.mxu0 %v567
        %939 = vmatpush.msra.mxu0 %v566
        %940 = vmatpush.msra.mxu0 %v565
        %941 = vmatpush.msra.mxu0 %v564
        %942 = vmatmul.f32.gmra.mxu0 %v406
        %v943 = vpop.f32.mrf.mxu0
        %v944 = vadd.f32 %v831, %v943
        %945 = vmatmul.f32.gmra.mxu0 %v410
        %v946 = vpop.f32.mrf.mxu0
        %v947 = vadd.f32 %v834, %v946
        %948 = vmatmul.f32.gmra.mxu0 %v414
        %v949 = vpop.f32.mrf.mxu0
        %v950 = vadd.f32 %v837, %v949
        %951 = vmatmul.f32.gmra.mxu0 %v418
        %v952 = vpop.f32.mrf.mxu0
        %v953 = vadd.f32 %v840, %v952
        %954 = vmatmul.f32.gmra.mxu0 %v422
        %v955 = vpop.f32.mrf.mxu0
        %v956 = vadd.f32 %v843, %v955
        %957 = vmatmul.f32.gmra.mxu0 %v426
        %v958 = vpop.f32.mrf.mxu0
        %v959 = vadd.f32 %v846, %v958
        %960 = vmatmul.f32.gmra.mxu0 %v430
        %v961 = vpop.f32.mrf.mxu0
        %v962 = vadd.f32 %v849, %v961
        %963 = vmatmul.f32.gmra.mxu0 %v434
        %v964 = vpop.f32.mrf.mxu0
        %v965 = vadd.f32 %v852, %v964
        %966 = vmatmul.f32.gmra.mxu0 %v438
        %v967 = vpop.f32.mrf.mxu0
        %v968 = vadd.f32 %v855, %v967
        %969 = vmatmul.f32.gmra.mxu0 %v442
        %v970 = vpop.f32.mrf.mxu0
        %v971 = vadd.f32 %v858, %v970
        %972 = vmatmul.f32.gmra.mxu0 %v446
        %v973 = vpop.f32.mrf.mxu0
        %v974 = vadd.f32 %v861, %v973
        %975 = vmatmul.f32.gmra.mxu0 %v450
        %v976 = vpop.f32.mrf.mxu0
        %v977 = vadd.f32 %v864, %v976
        %978 = vmatmul.f32.gmra.mxu0 %v454
        %v979 = vpop.f32.mrf.mxu0
        %v980 = vadd.f32 %v867, %v979
        %981 = vmatmul.f32.gmra.mxu0 %v458
        %v982 = vpop.f32.mrf.mxu0
        %v983 = vadd.f32 %v870, %v982
        %984 = vmatmul.f32.gmra.mxu0 %v462
        %v985 = vpop.f32.mrf.mxu0
        %v986 = vadd.f32 %v873, %v985
        %987 = vmatmul.f32.gmra.mxu0 %v466
        %v988 = vpop.f32.mrf.mxu0
        %v989 = vadd.f32 %v876, %v988
        %990 = vmatmul.f32.gmra.mxu0 %v470
        %v991 = vpop.f32.mrf.mxu0
        %v992 = vadd.f32 %v879, %v991
        %993 = vmatmul.f32.gmra.mxu0 %v474
        %v994 = vpop.f32.mrf.mxu0
        %v995 = vadd.f32 %v882, %v994
        %996 = vmatmul.f32.gmra.mxu0 %v478
        %v997 = vpop.f32.mrf.mxu0
        %v998 = vadd.f32 %v885, %v997
        %999 = vmatmul.f32.gmra.mxu0 %v482
        %v1000 = vpop.f32.mrf.mxu0
        %v1001 = vadd.f32 %v888, %v1000
        %1002 = vmatmul.f32.gmra.mxu0 %v486
        %v1003 = vpop.f32.mrf.mxu0
        %v1004 = vadd.f32 %v891, %v1003
        %1005 = vmatmul.f32.gmra.mxu0 %v490
        %v1006 = vpop.f32.mrf.mxu0
        %v1007 = vadd.f32 %v894, %v1006
        %1008 = vmatmul.f32.gmra.mxu0 %v494
        %v1009 = vpop.f32.mrf.mxu0
        %v1010 = vadd.f32 %v897, %v1009
        %1011 = vmatmul.f32.gmra.mxu0 %v498
        %v1012 = vpop.f32.mrf.mxu0
        %v1013 = vadd.f32 %v900, %v1012
        %1014 = vmatmul.f32.gmra.mxu0 %v502
        %v1015 = vpop.f32.mrf.mxu0
        %v1016 = vadd.f32 %v903, %v1015
        %1017 = vmatmul.f32.gmra.mxu0 %v506
        %v1018 = vpop.f32.mrf.mxu0
        %v1019 = vadd.f32 %v906, %v1018
        %1020 = vmatmul.f32.gmra.mxu0 %v510
        %v1021 = vpop.f32.mrf.mxu0
        %v1022 = vadd.f32 %v909, %v1021
        %1023 = vmatmul.f32.gmra.mxu0 %v514
        %v1024 = vpop.f32.mrf.mxu0
        %v1025 = vadd.f32 %v912, %v1024
        %1026 = vmatmul.f32.gmra.mxu0 %v518
        %v1027 = vpop.f32.mrf.mxu0
        %v1028 = vadd.f32 %v915, %v1027
        %1029 = vmatmul.f32.gmra.mxu0 %v522
        %v1030 = vpop.f32.mrf.mxu0
        %v1031 = vadd.f32 %v918, %v1030
        %1032 = vmatmul.f32.gmra.mxu0 %v526
        %v1033 = vpop.f32.mrf.mxu0
        %v1034 = vadd.f32 %v921, %v1033
        %1035 = vmatmul.f32.gmra.mxu0 %v530
        %v1036 = vpop.f32.mrf.mxu0
        %v1037 = vadd.f32 %v924, %v1036
        %1038 = vdwg.mxu0
        %1039 = vmatpush.msra.mxu0 0.0
        %1040 = vmatpush.msra.mxu0 %v698
        %1041 = vmatpush.msra.mxu0 %v593
        %1042 = vmatpush.msra.mxu0 %v592
        %1043 = vmatpush.msra.mxu0 %v591
        %1044 = vmatpush.msra.mxu0 %v590
        %1045 = vmatpush.msra.mxu0 %v589
        %1046 = vmatpush.msra.mxu0 %v588
        %1047 = vmatpush.msra.mxu0 %v587
        %1048 = vmatpush.msra.mxu0 %v586
        %1049 = vmatpush.msra.mxu0 %v585
        %1050 = vmatpush.msra.mxu0 %v584
        %1051 = vmatpush.msra.mxu0 %v583
        %1052 = vmatpush.msra.mxu0 %v582
        %1053 = vmatpush.msra.mxu0 %v581
        %1054 = vmatpush.msra.mxu0 %v580
        %1055 = vmatmul.f32.gmra.mxu0 %v601
        %v1056 = vpop.f32.mrf.mxu0
        %v1057 = vadd.f32 %v944, %v1056
        %1058 = vmatmul.f32.gmra.mxu0 %v604
        %v1059 = vpop.f32.mrf.mxu0
        %v1060 = vadd.f32 %v947, %v1059
        %1061 = vmatmul.f32.gmra.mxu0 %v607
        %v1062 = vpop.f32.mrf.mxu0
        %v1063 = vadd.f32 %v950, %v1062
        %1064 = vmatmul.f32.gmra.mxu0 %v610
        %v1065 = vpop.f32.mrf.mxu0
        %v1066 = vadd.f32 %v953, %v1065
        %1067 = vmatmul.f32.gmra.mxu0 %v613
        %v1068 = vpop.f32.mrf.mxu0
        %v1069 = vadd.f32 %v956, %v1068
        %1070 = vmatmul.f32.gmra.mxu0 %v616
        %v1071 = vpop.f32.mrf.mxu0
        %v1072 = vadd.f32 %v959, %v1071
        %1073 = vmatmul.f32.gmra.mxu0 %v619
        %v1074 = vpop.f32.mrf.mxu0
        %v1075 = vadd.f32 %v962, %v1074
        %1076 = vmatmul.f32.gmra.mxu0 %v622
        %v1077 = vpop.f32.mrf.mxu0
        %v1078 = vadd.f32 %v965, %v1077
        %1079 = vmatmul.f32.gmra.mxu0 %v625
        %v1080 = vpop.f32.mrf.mxu0
        %v1081 = vadd.f32 %v968, %v1080
        %1082 = vmatmul.f32.gmra.mxu0 %v628
        %v1083 = vpop.f32.mrf.mxu0
        %v1084 = vadd.f32 %v971, %v1083
        %1085 = vmatmul.f32.gmra.mxu0 %v631
        %v1086 = vpop.f32.mrf.mxu0
        %v1087 = vadd.f32 %v974, %v1086
        %1088 = vmatmul.f32.gmra.mxu0 %v634
        %v1089 = vpop.f32.mrf.mxu0
        %v1090 = vadd.f32 %v977, %v1089
        %1091 = vmatmul.f32.gmra.mxu0 %v637
        %v1092 = vpop.f32.mrf.mxu0
        %v1093 = vadd.f32 %v980, %v1092
        %1094 = vmatmul.f32.gmra.mxu0 %v640
        %v1095 = vpop.f32.mrf.mxu0
        %v1096 = vadd.f32 %v983, %v1095
        %1097 = vmatmul.f32.gmra.mxu0 %v643
        %v1098 = vpop.f32.mrf.mxu0
        %v1099 = vadd.f32 %v986, %v1098
        %1100 = vmatmul.f32.gmra.mxu0 %v646
        %v1101 = vpop.f32.mrf.mxu0
        %v1102 = vadd.f32 %v989, %v1101
        %1103 = vmatmul.f32.gmra.mxu0 %v649
        %v1104 = vpop.f32.mrf.mxu0
        %v1105 = vadd.f32 %v992, %v1104
        %1106 = vmatmul.f32.gmra.mxu0 %v652
        %v1107 = vpop.f32.mrf.mxu0
        %v1108 = vadd.f32 %v995, %v1107
        %1109 = vmatmul.f32.gmra.mxu0 %v655
        %v1110 = vpop.f32.mrf.mxu0
        %v1111 = vadd.f32 %v998, %v1110
        %1112 = vmatmul.f32.gmra.mxu0 %v658
        %v1113 = vpop.f32.mrf.mxu0
        %v1114 = vadd.f32 %v1001, %v1113
        %1115 = vmatmul.f32.gmra.mxu0 %v661
        %v1116 = vpop.f32.mrf.mxu0
        %v1117 = vadd.f32 %v1004, %v1116
        %1118 = vmatmul.f32.gmra.mxu0 %v664
        %v1119 = vpop.f32.mrf.mxu0
        %v1120 = vadd.f32 %v1007, %v1119
        %1121 = vmatmul.f32.gmra.mxu0 %v667
        %v1122 = vpop.f32.mrf.mxu0
        %v1123 = vadd.f32 %v1010, %v1122
        %1124 = vmatmul.f32.gmra.mxu0 %v670
        %v1125 = vpop.f32.mrf.mxu0
        %v1126 = vadd.f32 %v1013, %v1125
        %1127 = vmatmul.f32.gmra.mxu0 %v673
        %v1128 = vpop.f32.mrf.mxu0
        %v1129 = vadd.f32 %v1016, %v1128
        %1130 = vmatmul.f32.gmra.mxu0 %v676
        %v1131 = vpop.f32.mrf.mxu0
        %v1132 = vadd.f32 %v1019, %v1131
        %1133 = vmatmul.f32.gmra.mxu0 %v679
        %v1134 = vpop.f32.mrf.mxu0
        %v1135 = vadd.f32 %v1022, %v1134
        %1136 = vmatmul.f32.gmra.mxu0 %v682
        %v1137 = vpop.f32.mrf.mxu0
        %v1138 = vadd.f32 %v1025, %v1137
        %1139 = vmatmul.f32.gmra.mxu0 %v685
        %v1140 = vpop.f32.mrf.mxu0
        %v1141 = vadd.f32 %v1028, %v1140
        %1142 = vmatmul.f32.gmra.mxu0 %v688
        %v1143 = vpop.f32.mrf.mxu0
        %v1144 = vadd.f32 %v1031, %v1143
        %1145 = vmatmul.f32.gmra.mxu0 %v691
        %v1146 = vpop.f32.mrf.mxu0
        %v1147 = vadd.f32 %v1034, %v1146
        %1148 = vmatmul.f32.gmra.mxu0 %v694
        %v1149 = vpop.f32.mrf.mxu0
        %v1150 = vadd.f32 %v1037, %v1149
        %1151 = vdwg.mxu0
        %v1152 = vld [vmem:[%s376] sm:$0xff]
        %v1153 = vld [vmem:[%s376 + $0x8] sm:$0xff]
        %v1154 = vld [vmem:[%s376 + $0x10] sm:$0xff]
        %v1155 = vld [vmem:[%s376 + $0x18] sm:$0xff]
        %v1156 = vld [vmem:[%s376 + $0x20] sm:$0xff]
        %v1157 = vld [vmem:[%s376 + $0x28] sm:$0xff]
        %v1158 = vld [vmem:[%s376 + $0x30] sm:$0xff]
        %v1159 = vld [vmem:[%s376 + $0x38] sm:$0xff]
        %v1160 = vld [vmem:[%s376 + $0x40] sm:$0xff]
        %v1161 = vld [vmem:[%s376 + $0x48] sm:$0xff]
        %v1162 = vld [vmem:[%s376 + $0x50] sm:$0xff]
        %v1163 = vld [vmem:[%s376 + $0x58] sm:$0xff]
        %v1164 = vld [vmem:[%s376 + $0x60] sm:$0xff]
        %v1165 = vld [vmem:[%s376 + $0x68] sm:$0xff]
        %v1166 = vld [vmem:[%s376 + $0x70] sm:$0xff]
        %v1167 = vld [vmem:[%s376 + $0x78] sm:$0xff]
        %v1168 = vld [vmem:[%s376 + $0x80] sm:$0xff]
        %v1169 = vld [vmem:[%s376 + $0x88] sm:$0xff]
        %v1170 = vld [vmem:[%s376 + $0x90] sm:$0xff]
        %v1171 = vld [vmem:[%s376 + $0x98] sm:$0xff]
        %v1172 = vld [vmem:[%s376 + $0xa0] sm:$0xff]
        %v1173 = vld [vmem:[%s376 + $0xa8] sm:$0xff]
        %v1174 = vld [vmem:[%s376 + $0xb0] sm:$0xff]
        %v1175 = vld [vmem:[%s376 + $0xb8] sm:$0xff]
        %v1176 = vld [vmem:[%s376 + $0xc0] sm:$0xff]
        %v1177 = vld [vmem:[%s376 + $0xc8] sm:$0xff]
        %v1178 = vld [vmem:[%s376 + $0xd0] sm:$0xff]
        %v1179 = vld [vmem:[%s376 + $0xd8] sm:$0xff]
        %v1180 = vld [vmem:[%s376 + $0xe0] sm:$0xff]
        %v1181 = vld [vmem:[%s376 + $0xe8] sm:$0xff]
        %v1182 = vld [vmem:[%s376 + $0xf0] sm:$0xff]
        %v1183 = vld [vmem:[%s376 + $0xf8] sm:$0xff]
        %v1184 = vld [vmem:[%s2] sm:$0x3]
        %1186 = vset.pattern.permute.xlu0 0
        %1187 = vperm.xlu0 %1186, %v1152
        %v1188 = vpop.permute.xlu0 %1187
        %1191 = vset.pattern.permute.xlu0 0
        %1192 = vperm.xlu0 %1191, %v1153
        %v1193 = vpop.permute.xlu0 %1192
        %1196 = vset.pattern.permute.xlu0 0
        %1197 = vperm.xlu0 %1196, %v1154
        %v1198 = vpop.permute.xlu0 %1197
        %1201 = vset.pattern.permute.xlu0 0
        %1202 = vperm.xlu0 %1201, %v1155
        %v1203 = vpop.permute.xlu0 %1202
        %1206 = vset.pattern.permute.xlu0 0
        %1207 = vperm.xlu0 %1206, %v1156
        %v1208 = vpop.permute.xlu0 %1207
        %1211 = vset.pattern.permute.xlu0 0
        %1212 = vperm.xlu0 %1211, %v1157
        %v1213 = vpop.permute.xlu0 %1212
        %1216 = vset.pattern.permute.xlu0 0
        %1217 = vperm.xlu0 %1216, %v1158
        %v1218 = vpop.permute.xlu0 %1217
        %1221 = vset.pattern.permute.xlu0 0
        %1222 = vperm.xlu0 %1221, %v1159
        %v1223 = vpop.permute.xlu0 %1222
        %1226 = vset.pattern.permute.xlu0 0
        %1227 = vperm.xlu0 %1226, %v1160
        %v1228 = vpop.permute.xlu0 %1227
        %1231 = vset.pattern.permute.xlu0 0
        %1232 = vperm.xlu0 %1231, %v1161
        %v1233 = vpop.permute.xlu0 %1232
        %1236 = vset.pattern.permute.xlu0 0
        %1237 = vperm.xlu0 %1236, %v1162
        %v1238 = vpop.permute.xlu0 %1237
        %1241 = vset.pattern.permute.xlu0 0
        %1242 = vperm.xlu0 %1241, %v1163
        %v1243 = vpop.permute.xlu0 %1242
        %1246 = vset.pattern.permute.xlu0 0
        %1247 = vperm.xlu0 %1246, %v1164
        %v1248 = vpop.permute.xlu0 %1247
        %1251 = vset.pattern.permute.xlu0 0
        %1252 = vperm.xlu0 %1251, %v1165
        %v1253 = vpop.permute.xlu0 %1252
        %1256 = vset.pattern.permute.xlu0 0
        %1257 = vperm.xlu0 %1256, %v1166
        %v1258 = vpop.permute.xlu0 %1257
        %1261 = vset.pattern.permute.xlu0 0
        %1262 = vperm.xlu0 %1261, %v1167
        %v1263 = vpop.permute.xlu0 %1262
        %1266 = vset.pattern.permute.xlu0 0
        %1267 = vperm.xlu0 %1266, %v1168
        %v1268 = vpop.permute.xlu0 %1267
        %1271 = vset.pattern.permute.xlu0 0
        %1272 = vperm.xlu0 %1271, %v1169
        %v1273 = vpop.permute.xlu0 %1272
        %1276 = vset.pattern.permute.xlu0 0
        %1277 = vperm.xlu0 %1276, %v1170
        %v1278 = vpop.permute.xlu0 %1277
        %1281 = vset.pattern.permute.xlu0 0
        %1282 = vperm.xlu0 %1281, %v1171
        %v1283 = vpop.permute.xlu0 %1282
        %1286 = vset.pattern.permute.xlu0 0
        %1287 = vperm.xlu0 %1286, %v1172
        %v1288 = vpop.permute.xlu0 %1287
        %1291 = vset.pattern.permute.xlu0 0
        %1292 = vperm.xlu0 %1291, %v1173
        %v1293 = vpop.permute.xlu0 %1292
        %1296 = vset.pattern.permute.xlu0 0
        %1297 = vperm.xlu0 %1296, %v1174
        %v1298 = vpop.permute.xlu0 %1297
        %1301 = vset.pattern.permute.xlu0 0
        %1302 = vperm.xlu0 %1301, %v1175
        %v1303 = vpop.permute.xlu0 %1302
        %1306 = vset.pattern.permute.xlu0 0
        %1307 = vperm.xlu0 %1306, %v1176
        %v1308 = vpop.permute.xlu0 %1307
        %1311 = vset.pattern.permute.xlu0 0
        %1312 = vperm.xlu0 %1311, %v1177
        %v1313 = vpop.permute.xlu0 %1312
        %1316 = vset.pattern.permute.xlu0 0
        %1317 = vperm.xlu0 %1316, %v1178
        %v1318 = vpop.permute.xlu0 %1317
        %1321 = vset.pattern.permute.xlu0 0
        %1322 = vperm.xlu0 %1321, %v1179
        %v1323 = vpop.permute.xlu0 %1322
        %1326 = vset.pattern.permute.xlu0 0
        %1327 = vperm.xlu0 %1326, %v1180
        %v1328 = vpop.permute.xlu0 %1327
        %1331 = vset.pattern.permute.xlu0 0
        %1332 = vperm.xlu0 %1331, %v1181
        %v1333 = vpop.permute.xlu0 %1332
        %1336 = vset.pattern.permute.xlu0 0
        %1337 = vperm.xlu0 %1336, %v1182
        %v1338 = vpop.permute.xlu0 %1337
        %1341 = vset.pattern.permute.xlu0 0
        %1342 = vperm.xlu0 %1341, %v1183
        %v1343 = vpop.permute.xlu0 %1342
        %v1345 = vperm.slane %v1184, 0
        %v1346 = vmul.f32 %v1188, %v1345
        %v1347 = vmul.f32 %v1193, %v1345
        %v1348 = vmul.f32 %v1198, %v1345
        %v1349 = vmul.f32 %v1203, %v1345
        %v1350 = vmul.f32 %v1208, %v1345
        %v1351 = vmul.f32 %v1213, %v1345
        %v1352 = vmul.f32 %v1218, %v1345
        %v1353 = vmul.f32 %v1223, %v1345
        %v1354 = vmul.f32 %v1228, %v1345
        %v1355 = vmul.f32 %v1233, %v1345
        %v1356 = vmul.f32 %v1238, %v1345
        %v1357 = vmul.f32 %v1243, %v1345
        %v1358 = vmul.f32 %v1248, %v1345
        %v1359 = vmul.f32 %v1253, %v1345
        %v1360 = vmul.f32 %v1258, %v1345
        %v1361 = vmul.f32 %v1263, %v1345
        %v1362 = vmul.f32 %v1268, %v1345
        %v1363 = vmul.f32 %v1273, %v1345
        %v1364 = vmul.f32 %v1278, %v1345
        %v1365 = vmul.f32 %v1283, %v1345
        %v1366 = vmul.f32 %v1288, %v1345
        %v1367 = vmul.f32 %v1293, %v1345
        %v1368 = vmul.f32 %v1298, %v1345
        %v1369 = vmul.f32 %v1303, %v1345
        %v1370 = vmul.f32 %v1308, %v1345
        %v1371 = vmul.f32 %v1313, %v1345
        %v1372 = vmul.f32 %v1318, %v1345
        %v1373 = vmul.f32 %v1323, %v1345
        %v1374 = vmul.f32 %v1328, %v1345
        %v1375 = vmul.f32 %v1333, %v1345
        %v1376 = vmul.f32 %v1338, %v1345
        %v1377 = vmul.f32 %v1343, %v1345
        %v1378 = vadd.f32 %v1057, %v1346
        %v1379 = vadd.f32 %v1060, %v1347
        %v1380 = vadd.f32 %v1063, %v1348
        %v1381 = vadd.f32 %v1066, %v1349
        %v1382 = vadd.f32 %v1069, %v1350
        %v1383 = vadd.f32 %v1072, %v1351
        %v1384 = vadd.f32 %v1075, %v1352
        %v1385 = vadd.f32 %v1078, %v1353
        %v1386 = vadd.f32 %v1081, %v1354
        %v1387 = vadd.f32 %v1084, %v1355
        %v1388 = vadd.f32 %v1087, %v1356
        %v1389 = vadd.f32 %v1090, %v1357
        %v1390 = vadd.f32 %v1093, %v1358
        %v1391 = vadd.f32 %v1096, %v1359
        %v1392 = vadd.f32 %v1099, %v1360
        %v1393 = vadd.f32 %v1102, %v1361
        %v1394 = vadd.f32 %v1105, %v1362
        %v1395 = vadd.f32 %v1108, %v1363
        %v1396 = vadd.f32 %v1111, %v1364
        %v1397 = vadd.f32 %v1114, %v1365
        %v1398 = vadd.f32 %v1117, %v1366
        %v1399 = vadd.f32 %v1120, %v1367
        %v1400 = vadd.f32 %v1123, %v1368
        %v1401 = vadd.f32 %v1126, %v1369
        %v1402 = vadd.f32 %v1129, %v1370
        %v1403 = vadd.f32 %v1132, %v1371
        %v1404 = vadd.f32 %v1135, %v1372
        %v1405 = vadd.f32 %v1138, %v1373
        %v1406 = vadd.f32 %v1141, %v1374
        %v1407 = vadd.f32 %v1144, %v1375
        %v1408 = vadd.f32 %v1147, %v1376
        %v1409 = vadd.f32 %v1150, %v1377
        %1410 = vset.pattern.permute.xlu0 1
        %1411 = vperm.xlu0 %1410, %v1152
        %v1412 = vpop.permute.xlu0 %1411
        %1414 = vset.pattern.permute.xlu0 1
        %1415 = vperm.xlu0 %1414, %v1153
        %v1416 = vpop.permute.xlu0 %1415
        %1418 = vset.pattern.permute.xlu0 1
        %1419 = vperm.xlu0 %1418, %v1154
        %v1420 = vpop.permute.xlu0 %1419
        %1422 = vset.pattern.permute.xlu0 1
        %1423 = vperm.xlu0 %1422, %v1155
        %v1424 = vpop.permute.xlu0 %1423
        %1426 = vset.pattern.permute.xlu0 1
        %1427 = vperm.xlu0 %1426, %v1156
        %v1428 = vpop.permute.xlu0 %1427
        %1430 = vset.pattern.permute.xlu0 1
        %1431 = vperm.xlu0 %1430, %v1157
        %v1432 = vpop.permute.xlu0 %1431
        %1434 = vset.pattern.permute.xlu0 1
        %1435 = vperm.xlu0 %1434, %v1158
        %v1436 = vpop.permute.xlu0 %1435
        %1438 = vset.pattern.permute.xlu0 1
        %1439 = vperm.xlu0 %1438, %v1159
        %v1440 = vpop.permute.xlu0 %1439
        %1442 = vset.pattern.permute.xlu0 1
        %1443 = vperm.xlu0 %1442, %v1160
        %v1444 = vpop.permute.xlu0 %1443
        %1446 = vset.pattern.permute.xlu0 1
        %1447 = vperm.xlu0 %1446, %v1161
        %v1448 = vpop.permute.xlu0 %1447
        %1450 = vset.pattern.permute.xlu0 1
        %1451 = vperm.xlu0 %1450, %v1162
        %v1452 = vpop.permute.xlu0 %1451
        %1454 = vset.pattern.permute.xlu0 1
        %1455 = vperm.xlu0 %1454, %v1163
        %v1456 = vpop.permute.xlu0 %1455
        %1458 = vset.pattern.permute.xlu0 1
        %1459 = vperm.xlu0 %1458, %v1164
        %v1460 = vpop.permute.xlu0 %1459
        %1462 = vset.pattern.permute.xlu0 1
        %1463 = vperm.xlu0 %1462, %v1165
        %v1464 = vpop.permute.xlu0 %1463
        %1466 = vset.pattern.permute.xlu0 1
        %1467 = vperm.xlu0 %1466, %v1166
        %v1468 = vpop.permute.xlu0 %1467
        %1470 = vset.pattern.permute.xlu0 1
        %1471 = vperm.xlu0 %1470, %v1167
        %v1472 = vpop.permute.xlu0 %1471
        %1474 = vset.pattern.permute.xlu0 1
        %1475 = vperm.xlu0 %1474, %v1168
        %v1476 = vpop.permute.xlu0 %1475
        %1478 = vset.pattern.permute.xlu0 1
        %1479 = vperm.xlu0 %1478, %v1169
        %v1480 = vpop.permute.xlu0 %1479
        %1482 = vset.pattern.permute.xlu0 1
        %1483 = vperm.xlu0 %1482, %v1170
        %v1484 = vpop.permute.xlu0 %1483
        %1486 = vset.pattern.permute.xlu0 1
        %1487 = vperm.xlu0 %1486, %v1171
        %v1488 = vpop.permute.xlu0 %1487
        %1490 = vset.pattern.permute.xlu0 1
        %1491 = vperm.xlu0 %1490, %v1172
        %v1492 = vpop.permute.xlu0 %1491
        %1494 = vset.pattern.permute.xlu0 1
        %1495 = vperm.xlu0 %1494, %v1173
        %v1496 = vpop.permute.xlu0 %1495
        %1498 = vset.pattern.permute.xlu0 1
        %1499 = vperm.xlu0 %1498, %v1174
        %v1500 = vpop.permute.xlu0 %1499
        %1502 = vset.pattern.permute.xlu0 1
        %1503 = vperm.xlu0 %1502, %v1175
        %v1504 = vpop.permute.xlu0 %1503
        %1506 = vset.pattern.permute.xlu0 1
        %1507 = vperm.xlu0 %1506, %v1176
        %v1508 = vpop.permute.xlu0 %1507
        %1510 = vset.pattern.permute.xlu0 1
        %1511 = vperm.xlu0 %1510, %v1177
        %v1512 = vpop.permute.xlu0 %1511
        %1514 = vset.pattern.permute.xlu0 1
        %1515 = vperm.xlu0 %1514, %v1178
        %v1516 = vpop.permute.xlu0 %1515
        %1518 = vset.pattern.permute.xlu0 1
        %1519 = vperm.xlu0 %1518, %v1179
        %v1520 = vpop.permute.xlu0 %1519
        %1522 = vset.pattern.permute.xlu0 1
        %1523 = vperm.xlu0 %1522, %v1180
        %v1524 = vpop.permute.xlu0 %1523
        %1526 = vset.pattern.permute.xlu0 1
        %1527 = vperm.xlu0 %1526, %v1181
        %v1528 = vpop.permute.xlu0 %1527
        %1530 = vset.pattern.permute.xlu0 1
        %1531 = vperm.xlu0 %1530, %v1182
        %v1532 = vpop.permute.xlu0 %1531
        %1534 = vset.pattern.permute.xlu0 1
        %1535 = vperm.xlu0 %1534, %v1183
        %v1536 = vpop.permute.xlu0 %1535
        %v1538 = vperm.slane %v1184, 1
        %v1539 = vmul.f32 %v1412, %v1538
        %v1540 = vmul.f32 %v1416, %v1538
        %v1541 = vmul.f32 %v1420, %v1538
        %v1542 = vmul.f32 %v1424, %v1538
        %v1543 = vmul.f32 %v1428, %v1538
        %v1544 = vmul.f32 %v1432, %v1538
        %v1545 = vmul.f32 %v1436, %v1538
        %v1546 = vmul.f32 %v1440, %v1538
        %v1547 = vmul.f32 %v1444, %v1538
        %v1548 = vmul.f32 %v1448, %v1538
        %v1549 = vmul.f32 %v1452, %v1538
        %v1550 = vmul.f32 %v1456, %v1538
        %v1551 = vmul.f32 %v1460, %v1538
        %v1552 = vmul.f32 %v1464, %v1538
        %v1553 = vmul.f32 %v1468, %v1538
        %v1554 = vmul.f32 %v1472, %v1538
        %v1555 = vmul.f32 %v1476, %v1538
        %v1556 = vmul.f32 %v1480, %v1538
        %v1557 = vmul.f32 %v1484, %v1538
        %v1558 = vmul.f32 %v1488, %v1538
        %v1559 = vmul.f32 %v1492, %v1538
        %v1560 = vmul.f32 %v1496, %v1538
        %v1561 = vmul.f32 %v1500, %v1538
        %v1562 = vmul.f32 %v1504, %v1538
        %v1563 = vmul.f32 %v1508, %v1538
        %v1564 = vmul.f32 %v1512, %v1538
        %v1565 = vmul.f32 %v1516, %v1538
        %v1566 = vmul.f32 %v1520, %v1538
        %v1567 = vmul.f32 %v1524, %v1538
        %v1568 = vmul.f32 %v1528, %v1538
        %v1569 = vmul.f32 %v1532, %v1538
        %v1570 = vmul.f32 %v1536, %v1538
        %v1571 = vadd.f32 %v1378, %v1539
        %v1572 = vadd.f32 %v1379, %v1540
        %v1573 = vadd.f32 %v1380, %v1541
        %v1574 = vadd.f32 %v1381, %v1542
        %v1575 = vadd.f32 %v1382, %v1543
        %v1576 = vadd.f32 %v1383, %v1544
        %v1577 = vadd.f32 %v1384, %v1545
        %v1578 = vadd.f32 %v1385, %v1546
        %v1579 = vadd.f32 %v1386, %v1547
        %v1580 = vadd.f32 %v1387, %v1548
        %v1581 = vadd.f32 %v1388, %v1549
        %v1582 = vadd.f32 %v1389, %v1550
        %v1583 = vadd.f32 %v1390, %v1551
        %v1584 = vadd.f32 %v1391, %v1552
        %v1585 = vadd.f32 %v1392, %v1553
        %v1586 = vadd.f32 %v1393, %v1554
        %v1587 = vadd.f32 %v1394, %v1555
        %v1588 = vadd.f32 %v1395, %v1556
        %v1589 = vadd.f32 %v1396, %v1557
        %v1590 = vadd.f32 %v1397, %v1558
        %v1591 = vadd.f32 %v1398, %v1559
        %v1592 = vadd.f32 %v1399, %v1560
        %v1593 = vadd.f32 %v1400, %v1561
        %v1594 = vadd.f32 %v1401, %v1562
        %v1595 = vadd.f32 %v1402, %v1563
        %v1596 = vadd.f32 %v1403, %v1564
        %v1597 = vadd.f32 %v1404, %v1565
        %v1598 = vadd.f32 %v1405, %v1566
        %v1599 = vadd.f32 %v1406, %v1567
        %v1600 = vadd.f32 %v1407, %v1568
        %v1601 = vadd.f32 %v1408, %v1569
        %v1602 = vadd.f32 %v1409, %v1570
        %v1603 = vmax.f32 %v1571, 0.0
        %v1604 = vmax.f32 %v1572, 0.0
        %v1605 = vmax.f32 %v1573, 0.0
        %v1606 = vmax.f32 %v1574, 0.0
        %v1607 = vmax.f32 %v1575, 0.0
        %v1608 = vmax.f32 %v1576, 0.0
        %v1609 = vmax.f32 %v1577, 0.0
        %v1610 = vmax.f32 %v1578, 0.0
        %v1611 = vmax.f32 %v1579, 0.0
        %v1612 = vmax.f32 %v1580, 0.0
        %v1613 = vmax.f32 %v1581, 0.0
        %v1614 = vmax.f32 %v1582, 0.0
        %v1615 = vmax.f32 %v1583, 0.0
        %v1616 = vmax.f32 %v1584, 0.0
        %v1617 = vmax.f32 %v1585, 0.0
        %v1618 = vmax.f32 %v1586, 0.0
        %v1619 = vmax.f32 %v1587, 0.0
        %v1620 = vmax.f32 %v1588, 0.0
        %v1621 = vmax.f32 %v1589, 0.0
        %v1622 = vmax.f32 %v1590, 0.0
        %v1623 = vmax.f32 %v1591, 0.0
        %v1624 = vmax.f32 %v1592, 0.0
        %v1625 = vmax.f32 %v1593, 0.0
        %v1626 = vmax.f32 %v1594, 0.0
        %v1627 = vmax.f32 %v1595, 0.0
        %v1628 = vmax.f32 %v1596, 0.0
        %v1629 = vmax.f32 %v1597, 0.0
        %v1630 = vmax.f32 %v1598, 0.0
        %v1631 = vmax.f32 %v1599, 0.0
        %v1632 = vmax.f32 %v1600, 0.0
        %v1633 = vmax.f32 %v1601, 0.0
        %v1634 = vmax.f32 %v1602, 0.0
        %v1635 = vld [vmem:[%s5] sm:$0xff]
        %v1636 = vld [vmem:[%s5 + $0x8] sm:$0xff]
        %v1637 = vld [vmem:[%s5 + $0x10] sm:$0xff]
        %v1638 = vld [vmem:[%s5 + $0x18] sm:$0xff]
        %v1639 = vld [vmem:[%s5 + $0x20] sm:$0xff]
        %v1640 = vld [vmem:[%s5 + $0x28] sm:$0xff]
        %v1641 = vld [vmem:[%s5 + $0x30] sm:$0xff]
        %v1642 = vld [vmem:[%s5 + $0x38] sm:$0xff]
        %v1643 = vld [vmem:[%s5 + $0x40] sm:$0xff]
        %v1644 = vld [vmem:[%s5 + $0x48] sm:$0xff]
        %v1645 = vld [vmem:[%s5 + $0x50] sm:$0xff]
        %v1646 = vld [vmem:[%s5 + $0x58] sm:$0xff]
        %v1647 = vld [vmem:[%s5 + $0x60] sm:$0xff]
        %v1648 = vld [vmem:[%s5 + $0x68] sm:$0xff]
        %v1649 = vld [vmem:[%s5 + $0x70] sm:$0xff]
        %v1650 = vld [vmem:[%s5 + $0x78] sm:$0xff]
        %v1651 = vld [vmem:[%s6] sm:$0x1]
        %v1653 = vperm.slane %v1651, 0
        %1655 = vmatpush.msra.mxu0 %v1650
        %1656 = vmatpush.msra.mxu0 %v1649
        %1657 = vmatpush.msra.mxu0 %v1648
        %1658 = vmatpush.msra.mxu0 %v1647
        %1659 = vmatpush.msra.mxu0 %v1646
        %1660 = vmatpush.msra.mxu0 %v1645
        %1661 = vmatpush.msra.mxu0 %v1644
        %1662 = vmatpush.msra.mxu0 %v1643
        %1663 = vmatpush.msra.mxu0 %v1642
        %1664 = vmatpush.msra.mxu0 %v1641
        %1665 = vmatpush.msra.mxu0 %v1640
        %1666 = vmatpush.msra.mxu0 %v1639
        %1667 = vmatpush.msra.mxu0 %v1638
        %1668 = vmatpush.msra.mxu0 %v1637
        %1669 = vmatpush.msra.mxu0 %v1636
        %1670 = vmatpush.msra.mxu0 %v1635
        %1671 = vmatmul.f32.gmra.mxu0 %v1603
        %v1672 = vpop.f32.mrf.mxu0
        %v1673 = vadd.f32 %v1653, %v1672
        %1674 = vmatmul.f32.gmra.mxu0 %v1604
        %v1675 = vpop.f32.mrf.mxu0
        %v1676 = vadd.f32 %v1653, %v1675
        %1677 = vmatmul.f32.gmra.mxu0 %v1605
        %v1678 = vpop.f32.mrf.mxu0
        %v1679 = vadd.f32 %v1653, %v1678
        %1680 = vmatmul.f32.gmra.mxu0 %v1606
        %v1681 = vpop.f32.mrf.mxu0
        %v1682 = vadd.f32 %v1653, %v1681
        %1683 = vmatmul.f32.gmra.mxu0 %v1607
        %v1684 = vpop.f32.mrf.mxu0
        %v1685 = vadd.f32 %v1653, %v1684
        %1686 = vmatmul.f32.gmra.mxu0 %v1608
        %v1687 = vpop.f32.mrf.mxu0
        %v1688 = vadd.f32 %v1653, %v1687
        %1689 = vmatmul.f32.gmra.mxu0 %v1609
        %v1690 = vpop.f32.mrf.mxu0
        %v1691 = vadd.f32 %v1653, %v1690
        %1692 = vmatmul.f32.gmra.mxu0 %v1610
        %v1693 = vpop.f32.mrf.mxu0
        %v1694 = vadd.f32 %v1653, %v1693
        %1695 = vmatmul.f32.gmra.mxu0 %v1611
        %v1696 = vpop.f32.mrf.mxu0
        %v1697 = vadd.f32 %v1653, %v1696
        %1698 = vmatmul.f32.gmra.mxu0 %v1612
        %v1699 = vpop.f32.mrf.mxu0
        %v1700 = vadd.f32 %v1653, %v1699
        %1701 = vmatmul.f32.gmra.mxu0 %v1613
        %v1702 = vpop.f32.mrf.mxu0
        %v1703 = vadd.f32 %v1653, %v1702
        %1704 = vmatmul.f32.gmra.mxu0 %v1614
        %v1705 = vpop.f32.mrf.mxu0
        %v1706 = vadd.f32 %v1653, %v1705
        %1707 = vmatmul.f32.gmra.mxu0 %v1615
        %v1708 = vpop.f32.mrf.mxu0
        %v1709 = vadd.f32 %v1653, %v1708
        %1710 = vmatmul.f32.gmra.mxu0 %v1616
        %v1711 = vpop.f32.mrf.mxu0
        %v1712 = vadd.f32 %v1653, %v1711
        %1713 = vmatmul.f32.gmra.mxu0 %v1617
        %v1714 = vpop.f32.mrf.mxu0
        %v1715 = vadd.f32 %v1653, %v1714
        %1716 = vmatmul.f32.gmra.mxu0 %v1618
        %v1717 = vpop.f32.mrf.mxu0
        %v1718 = vadd.f32 %v1653, %v1717
        %1719 = vmatmul.f32.gmra.mxu0 %v1619
        %v1720 = vpop.f32.mrf.mxu0
        %v1721 = vadd.f32 %v1653, %v1720
        %1722 = vmatmul.f32.gmra.mxu0 %v1620
        %v1723 = vpop.f32.mrf.mxu0
        %v1724 = vadd.f32 %v1653, %v1723
        %1725 = vmatmul.f32.gmra.mxu0 %v1621
        %v1726 = vpop.f32.mrf.mxu0
        %v1727 = vadd.f32 %v1653, %v1726
        %1728 = vmatmul.f32.gmra.mxu0 %v1622
        %v1729 = vpop.f32.mrf.mxu0
        %v1730 = vadd.f32 %v1653, %v1729
        %1731 = vmatmul.f32.gmra.mxu0 %v1623
        %v1732 = vpop.f32.mrf.mxu0
        %v1733 = vadd.f32 %v1653, %v1732
        %1734 = vmatmul.f32.gmra.mxu0 %v1624
        %v1735 = vpop.f32.mrf.mxu0
        %v1736 = vadd.f32 %v1653, %v1735
        %1737 = vmatmul.f32.gmra.mxu0 %v1625
        %v1738 = vpop.f32.mrf.mxu0
        %v1739 = vadd.f32 %v1653, %v1738
        %1740 = vmatmul.f32.gmra.mxu0 %v1626
        %v1741 = vpop.f32.mrf.mxu0
        %v1742 = vadd.f32 %v1653, %v1741
        %1743 = vmatmul.f32.gmra.mxu0 %v1627
        %v1744 = vpop.f32.mrf.mxu0
        %v1745 = vadd.f32 %v1653, %v1744
        %1746 = vmatmul.f32.gmra.mxu0 %v1628
        %v1747 = vpop.f32.mrf.mxu0
        %v1748 = vadd.f32 %v1653, %v1747
        %1749 = vmatmul.f32.gmra.mxu0 %v1629
        %v1750 = vpop.f32.mrf.mxu0
        %v1751 = vadd.f32 %v1653, %v1750
        %1752 = vmatmul.f32.gmra.mxu0 %v1630
        %v1753 = vpop.f32.mrf.mxu0
        %v1754 = vadd.f32 %v1653, %v1753
        %1755 = vmatmul.f32.gmra.mxu0 %v1631
        %v1756 = vpop.f32.mrf.mxu0
        %v1757 = vadd.f32 %v1653, %v1756
        %1758 = vmatmul.f32.gmra.mxu0 %v1632
        %v1759 = vpop.f32.mrf.mxu0
        %v1760 = vadd.f32 %v1653, %v1759
        %1761 = vmatmul.f32.gmra.mxu0 %v1633
        %v1762 = vpop.f32.mrf.mxu0
        %v1763 = vadd.f32 %v1653, %v1762
        %1764 = vmatmul.f32.gmra.mxu0 %v1634
        %v1765 = vpop.f32.mrf.mxu0
        %v1766 = vadd.f32 %v1653, %v1765
        %1767 = vdwg.mxu0
        %v1768 = vmax.f32 %v1673, 0.0
        %v1769 = vmax.f32 %v1676, 0.0
        %v1770 = vmax.f32 %v1679, 0.0
        %v1771 = vmax.f32 %v1682, 0.0
        %v1772 = vmax.f32 %v1685, 0.0
        %v1773 = vmax.f32 %v1688, 0.0
        %v1774 = vmax.f32 %v1691, 0.0
        %v1775 = vmax.f32 %v1694, 0.0
        %v1776 = vmax.f32 %v1697, 0.0
        %v1777 = vmax.f32 %v1700, 0.0
        %v1778 = vmax.f32 %v1703, 0.0
        %v1779 = vmax.f32 %v1706, 0.0
        %v1780 = vmax.f32 %v1709, 0.0
        %v1781 = vmax.f32 %v1712, 0.0
        %v1782 = vmax.f32 %v1715, 0.0
        %v1783 = vmax.f32 %v1718, 0.0
        %v1784 = vmax.f32 %v1721, 0.0
        %v1785 = vmax.f32 %v1724, 0.0
        %v1786 = vmax.f32 %v1727, 0.0
        %v1787 = vmax.f32 %v1730, 0.0
        %v1788 = vmax.f32 %v1733, 0.0
        %v1789 = vmax.f32 %v1736, 0.0
        %v1790 = vmax.f32 %v1739, 0.0
        %v1791 = vmax.f32 %v1742, 0.0
        %v1792 = vmax.f32 %v1745, 0.0
        %v1793 = vmax.f32 %v1748, 0.0
        %v1794 = vmax.f32 %v1751, 0.0
        %v1795 = vmax.f32 %v1754, 0.0
        %v1796 = vmax.f32 %v1757, 0.0
        %v1797 = vmax.f32 %v1760, 0.0
        %v1798 = vmax.f32 %v1763, 0.0
        %v1799 = vmax.f32 %v1766, 0.0
        %v1800 = vld [vmem:[%s7] sm:$0xff]
        %v1801 = vld [vmem:[%s7 + $0x8] sm:$0xff]
        %v1802 = vld [vmem:[%s7 + $0x10] sm:$0xff]
        %v1803 = vld [vmem:[%s7 + $0x18] sm:$0xff]
        %v1804 = vld [vmem:[%s7 + $0x20] sm:$0xff]
        %v1805 = vld [vmem:[%s7 + $0x28] sm:$0xff]
        %v1806 = vld [vmem:[%s7 + $0x30] sm:$0xff]
        %v1807 = vld [vmem:[%s7 + $0x38] sm:$0xff]
        %v1808 = vld [vmem:[%s7 + $0x40] sm:$0xff]
        %v1809 = vld [vmem:[%s7 + $0x48] sm:$0xff]
        %v1810 = vld [vmem:[%s7 + $0x50] sm:$0xff]
        %v1811 = vld [vmem:[%s7 + $0x58] sm:$0xff]
        %v1812 = vld [vmem:[%s7 + $0x60] sm:$0xff]
        %v1813 = vld [vmem:[%s7 + $0x68] sm:$0xff]
        %v1814 = vld [vmem:[%s7 + $0x70] sm:$0xff]
        %v1815 = vld [vmem:[%s7 + $0x78] sm:$0xff]
        %v1816 = vld [vmem:[%s8] sm:$0x1]
        %v1818 = vperm.slane %v1816, 0
        %1820 = vmatpush.msra.mxu0 %v1815
        %1821 = vmatpush.msra.mxu0 %v1814
        %1822 = vmatpush.msra.mxu0 %v1813
        %1823 = vmatpush.msra.mxu0 %v1812
        %1824 = vmatpush.msra.mxu0 %v1811
        %1825 = vmatpush.msra.mxu0 %v1810
        %1826 = vmatpush.msra.mxu0 %v1809
        %1827 = vmatpush.msra.mxu0 %v1808
        %1828 = vmatpush.msra.mxu0 %v1807
        %1829 = vmatpush.msra.mxu0 %v1806
        %1830 = vmatpush.msra.mxu0 %v1805
        %1831 = vmatpush.msra.mxu0 %v1804
        %1832 = vmatpush.msra.mxu0 %v1803
        %1833 = vmatpush.msra.mxu0 %v1802
        %1834 = vmatpush.msra.mxu0 %v1801
        %1835 = vmatpush.msra.mxu0 %v1800
        %1836 = vmatmul.f32.gmra.mxu0 %v1768
        %v1837 = vpop.f32.mrf.mxu0
        %v1838 = vadd.f32 %v1818, %v1837
        %1839 = vmatmul.f32.gmra.mxu0 %v1769
        %v1840 = vpop.f32.mrf.mxu0
        %v1841 = vadd.f32 %v1818, %v1840
        %1842 = vmatmul.f32.gmra.mxu0 %v1770
        %v1843 = vpop.f32.mrf.mxu0
        %v1844 = vadd.f32 %v1818, %v1843
        %1845 = vmatmul.f32.gmra.mxu0 %v1771
        %v1846 = vpop.f32.mrf.mxu0
        %v1847 = vadd.f32 %v1818, %v1846
        %1848 = vmatmul.f32.gmra.mxu0 %v1772
        %v1849 = vpop.f32.mrf.mxu0
        %v1850 = vadd.f32 %v1818, %v1849
        %1851 = vmatmul.f32.gmra.mxu0 %v1773
        %v1852 = vpop.f32.mrf.mxu0
        %v1853 = vadd.f32 %v1818, %v1852
        %1854 = vmatmul.f32.gmra.mxu0 %v1774
        %v1855 = vpop.f32.mrf.mxu0
        %v1856 = vadd.f32 %v1818, %v1855
        %1857 = vmatmul.f32.gmra.mxu0 %v1775
        %v1858 = vpop.f32.mrf.mxu0
        %v1859 = vadd.f32 %v1818, %v1858
        %1860 = vmatmul.f32.gmra.mxu0 %v1776
        %v1861 = vpop.f32.mrf.mxu0
        %v1862 = vadd.f32 %v1818, %v1861
        %1863 = vmatmul.f32.gmra.mxu0 %v1777
        %v1864 = vpop.f32.mrf.mxu0
        %v1865 = vadd.f32 %v1818, %v1864
        %1866 = vmatmul.f32.gmra.mxu0 %v1778
        %v1867 = vpop.f32.mrf.mxu0
        %v1868 = vadd.f32 %v1818, %v1867
        %1869 = vmatmul.f32.gmra.mxu0 %v1779
        %v1870 = vpop.f32.mrf.mxu0
        %v1871 = vadd.f32 %v1818, %v1870
        %1872 = vmatmul.f32.gmra.mxu0 %v1780
        %v1873 = vpop.f32.mrf.mxu0
        %v1874 = vadd.f32 %v1818, %v1873
        %1875 = vmatmul.f32.gmra.mxu0 %v1781
        %v1876 = vpop.f32.mrf.mxu0
        %v1877 = vadd.f32 %v1818, %v1876
        %1878 = vmatmul.f32.gmra.mxu0 %v1782
        %v1879 = vpop.f32.mrf.mxu0
        %v1880 = vadd.f32 %v1818, %v1879
        %1881 = vmatmul.f32.gmra.mxu0 %v1783
        %v1882 = vpop.f32.mrf.mxu0
        %v1883 = vadd.f32 %v1818, %v1882
        %1884 = vmatmul.f32.gmra.mxu0 %v1784
        %v1885 = vpop.f32.mrf.mxu0
        %v1886 = vadd.f32 %v1818, %v1885
        %1887 = vmatmul.f32.gmra.mxu0 %v1785
        %v1888 = vpop.f32.mrf.mxu0
        %v1889 = vadd.f32 %v1818, %v1888
        %1890 = vmatmul.f32.gmra.mxu0 %v1786
        %v1891 = vpop.f32.mrf.mxu0
        %v1892 = vadd.f32 %v1818, %v1891
        %1893 = vmatmul.f32.gmra.mxu0 %v1787
        %v1894 = vpop.f32.mrf.mxu0
        %v1895 = vadd.f32 %v1818, %v1894
        %1896 = vmatmul.f32.gmra.mxu0 %v1788
        %v1897 = vpop.f32.mrf.mxu0
        %v1898 = vadd.f32 %v1818, %v1897
        %1899 = vmatmul.f32.gmra.mxu0 %v1789
        %v1900 = vpop.f32.mrf.mxu0
        %v1901 = vadd.f32 %v1818, %v1900
        %1902 = vmatmul.f32.gmra.mxu0 %v1790
        %v1903 = vpop.f32.mrf.mxu0
        %v1904 = vadd.f32 %v1818, %v1903
        %1905 = vmatmul.f32.gmra.mxu0 %v1791
        %v1906 = vpop.f32.mrf.mxu0
        %v1907 = vadd.f32 %v1818, %v1906
        %1908 = vmatmul.f32.gmra.mxu0 %v1792
        %v1909 = vpop.f32.mrf.mxu0
        %v1910 = vadd.f32 %v1818, %v1909
        %1911 = vmatmul.f32.gmra.mxu0 %v1793
        %v1912 = vpop.f32.mrf.mxu0
        %v1913 = vadd.f32 %v1818, %v1912
        %1914 = vmatmul.f32.gmra.mxu0 %v1794
        %v1915 = vpop.f32.mrf.mxu0
        %v1916 = vadd.f32 %v1818, %v1915
        %1917 = vmatmul.f32.gmra.mxu0 %v1795
        %v1918 = vpop.f32.mrf.mxu0
        %v1919 = vadd.f32 %v1818, %v1918
        %1920 = vmatmul.f32.gmra.mxu0 %v1796
        %v1921 = vpop.f32.mrf.mxu0
        %v1922 = vadd.f32 %v1818, %v1921
        %1923 = vmatmul.f32.gmra.mxu0 %v1797
        %v1924 = vpop.f32.mrf.mxu0
        %v1925 = vadd.f32 %v1818, %v1924
        %1926 = vmatmul.f32.gmra.mxu0 %v1798
        %v1927 = vpop.f32.mrf.mxu0
        %v1928 = vadd.f32 %v1818, %v1927
        %1929 = vmatmul.f32.gmra.mxu0 %v1799
        %v1930 = vpop.f32.mrf.mxu0
        %v1931 = vadd.f32 %v1818, %v1930
        %1932 = vdwg.mxu0
        %1933 = vst [vmem:[%s367] sm:$0xff] %v1838
        %1934 = vst [vmem:[%s367 + $0x8] sm:$0xff] %v1841
        %1935 = vst [vmem:[%s367 + $0x10] sm:$0xff] %v1844
        %1936 = vst [vmem:[%s367 + $0x18] sm:$0xff] %v1847
        %1937 = vst [vmem:[%s367 + $0x20] sm:$0xff] %v1850
        %1938 = vst [vmem:[%s367 + $0x28] sm:$0xff] %v1853
        %1939 = vst [vmem:[%s367 + $0x30] sm:$0xff] %v1856
        %1940 = vst [vmem:[%s367 + $0x38] sm:$0xff] %v1859
        %1941 = vst [vmem:[%s367 + $0x40] sm:$0xff] %v1862
        %1942 = vst [vmem:[%s367 + $0x48] sm:$0xff] %v1865
        %1943 = vst [vmem:[%s367 + $0x50] sm:$0xff] %v1868
        %1944 = vst [vmem:[%s367 + $0x58] sm:$0xff] %v1871
        %1945 = vst [vmem:[%s367 + $0x60] sm:$0xff] %v1874
        %1946 = vst [vmem:[%s367 + $0x68] sm:$0xff] %v1877
        %1947 = vst [vmem:[%s367 + $0x70] sm:$0xff] %v1880
        %1948 = vst [vmem:[%s367 + $0x78] sm:$0xff] %v1883
        %1949 = vst [vmem:[%s367 + $0x80] sm:$0xff] %v1886
        %1950 = vst [vmem:[%s367 + $0x88] sm:$0xff] %v1889
        %1951 = vst [vmem:[%s367 + $0x90] sm:$0xff] %v1892
        %1952 = vst [vmem:[%s367 + $0x98] sm:$0xff] %v1895
        %1953 = vst [vmem:[%s367 + $0xa0] sm:$0xff] %v1898
        %1954 = vst [vmem:[%s367 + $0xa8] sm:$0xff] %v1901
        %1955 = vst [vmem:[%s367 + $0xb0] sm:$0xff] %v1904
        %1956 = vst [vmem:[%s367 + $0xb8] sm:$0xff] %v1907
        %1957 = vst [vmem:[%s367 + $0xc0] sm:$0xff] %v1910
        %1958 = vst [vmem:[%s367 + $0xc8] sm:$0xff] %v1913
        %1959 = vst [vmem:[%s367 + $0xd0] sm:$0xff] %v1916
        %1960 = vst [vmem:[%s367 + $0xd8] sm:$0xff] %v1919
        %1961 = vst [vmem:[%s367 + $0xe0] sm:$0xff] %v1922
        %1962 = vst [vmem:[%s367 + $0xe8] sm:$0xff] %v1925
        %1963 = vst [vmem:[%s367 + $0xf0] sm:$0xff] %v1928
        %1964 = vst [vmem:[%s367 + $0xf8] sm:$0xff] %v1931
        %s1965 = sand.u32 %s227, 1
        %s1966 = sand.u32 %s227, 1
        %s1967 = smul.addr %s1966, 256
        %s1968 = scalar_lea.vmem [#allocation2], %s1967
        // Predicated region
        $region57: #{mc_init_embedding2.1} parent=55 // pred_check
          %p1969 = pneg %p237
        $region58: #{mc_init_embedding2.1} parent=55 // pred_check_branch
          %1971 = sbr.rel (%p1969) target = $region60
        $region59: #{mc_init_embedding2.1} parent=55 // pred_region
          %s1972 = smul.u32 32, %s20
          %s1973 = ssub.s32 125, %s1972
          %p1974 = scmp.lt.s32.totalorder %s1973, 32
          %s1975 = scalar_select %p1974, %s1973, 32
          %s1976 = smul.u32 8, %s1975
          %p1977 = scmp.ne.s32.totalorder 0, %s1976
          %s1978 = smul.addr %s1972, 8
          %s1979 = scalar_lea.vmem %s9, %s1978
          // Predicated region
          $region61: #{mc_init_embedding2.1} parent=59 // pred_check
            %p1980 = pneg %p1977
          $region62: #{mc_init_embedding2.1} parent=59 // pred_check_branch
            %1982 = sbr.rel (%p1980) target = $region64
          $region63: #{mc_init_embedding2.1} parent=59 // pred_region
            // Predicated region
            $region65: #{mc_init_embedding2.1} parent=63 // pred_check
              _
            $region66: #{mc_init_embedding2.1} parent=63 // pred_check_branch
              %1984 = sbr.rel (0) target = $region68
            $region67: #{mc_init_embedding2.1} parent=63 // pred_region
              // Predicated region
              $region87: #{mc_init_embedding2.1} parent=67 // pred_check
                _
              $region88: #{mc_init_embedding2.1} parent=67 // pred_check_branch
                %2096 = sbr.rel (0) target = $region90
              $region89: #{mc_init_embedding2.1} parent=67 // pred_region
                %s2097 = sshrl.u32 %s1975, 5
                // While loop
                $region91: #{mc_init_embedding2.1} parent=89 // loop_pre_header
                  _
                $region92: #{mc_init_embedding2.1} parent=89 // loop_header
                  %s2099 = sphi 0, %s2101
                  %p2100 = scmp.ge.s32.totalorder %s2099, %s2097
                  %s2104 = sphi 0, %s2173
                  %s2105 = sphi %s1968, %s2176
                  %s2106 = sphi %s1979, %s2177
                $region93: #{mc_init_embedding2.1} parent=89 // loop_header_branch
                  %2103 = sbr.rel (%p2100) target = $region97
                $region94: #{mc_init_embedding2.1} parent=89 // loop_body
                  %v2107 = vld [vmem:[%s2105] sm:$0xff]
                  %2108 = vst [vmem:[%s2106] sm:$0xff] %v2107
                  %v2109 = vld [vmem:[%s2105 + $0x8] sm:$0xff]
                  %2110 = vst [vmem:[%s2106 + $0x8] sm:$0xff] %v2109
                  %v2111 = vld [vmem:[%s2105 + $0x10] sm:$0xff]
                  %2112 = vst [vmem:[%s2106 + $0x10] sm:$0xff] %v2111
                  %v2113 = vld [vmem:[%s2105 + $0x18] sm:$0xff]
                  %2114 = vst [vmem:[%s2106 + $0x18] sm:$0xff] %v2113
                  %v2115 = vld [vmem:[%s2105 + $0x20] sm:$0xff]
                  %2116 = vst [vmem:[%s2106 + $0x20] sm:$0xff] %v2115
                  %v2117 = vld [vmem:[%s2105 + $0x28] sm:$0xff]
                  %2118 = vst [vmem:[%s2106 + $0x28] sm:$0xff] %v2117
                  %v2119 = vld [vmem:[%s2105 + $0x30] sm:$0xff]
                  %2120 = vst [vmem:[%s2106 + $0x30] sm:$0xff] %v2119
                  %v2121 = vld [vmem:[%s2105 + $0x38] sm:$0xff]
                  %2122 = vst [vmem:[%s2106 + $0x38] sm:$0xff] %v2121
                  %v2123 = vld [vmem:[%s2105 + $0x40] sm:$0xff]
                  %2124 = vst [vmem:[%s2106 + $0x40] sm:$0xff] %v2123
                  %v2125 = vld [vmem:[%s2105 + $0x48] sm:$0xff]
                  %2126 = vst [vmem:[%s2106 + $0x48] sm:$0xff] %v2125
                  %v2127 = vld [vmem:[%s2105 + $0x50] sm:$0xff]
                  %2128 = vst [vmem:[%s2106 + $0x50] sm:$0xff] %v2127
                  %v2129 = vld [vmem:[%s2105 + $0x58] sm:$0xff]
                  %2130 = vst [vmem:[%s2106 + $0x58] sm:$0xff] %v2129
                  %v2131 = vld [vmem:[%s2105 + $0x60] sm:$0xff]
                  %2132 = vst [vmem:[%s2106 + $0x60] sm:$0xff] %v2131
                  %v2133 = vld [vmem:[%s2105 + $0x68] sm:$0xff]
                  %2134 = vst [vmem:[%s2106 + $0x68] sm:$0xff] %v2133
                  %v2135 = vld [vmem:[%s2105 + $0x70] sm:$0xff]
                  %2136 = vst [vmem:[%s2106 + $0x70] sm:$0xff] %v2135
                  %v2137 = vld [vmem:[%s2105 + $0x78] sm:$0xff]
                  %2138 = vst [vmem:[%s2106 + $0x78] sm:$0xff] %v2137
                  %v2139 = vld [vmem:[%s2105 + $0x80] sm:$0xff]
                  %2140 = vst [vmem:[%s2106 + $0x80] sm:$0xff] %v2139
                  %v2141 = vld [vmem:[%s2105 + $0x88] sm:$0xff]
                  %2142 = vst [vmem:[%s2106 + $0x88] sm:$0xff] %v2141
                  %v2143 = vld [vmem:[%s2105 + $0x90] sm:$0xff]
                  %2144 = vst [vmem:[%s2106 + $0x90] sm:$0xff] %v2143
                  %v2145 = vld [vmem:[%s2105 + $0x98] sm:$0xff]
                  %2146 = vst [vmem:[%s2106 + $0x98] sm:$0xff] %v2145
                  %v2147 = vld [vmem:[%s2105 + $0xa0] sm:$0xff]
                  %2148 = vst [vmem:[%s2106 + $0xa0] sm:$0xff] %v2147
                  %v2149 = vld [vmem:[%s2105 + $0xa8] sm:$0xff]
                  %2150 = vst [vmem:[%s2106 + $0xa8] sm:$0xff] %v2149
                  %v2151 = vld [vmem:[%s2105 + $0xb0] sm:$0xff]
                  %2152 = vst [vmem:[%s2106 + $0xb0] sm:$0xff] %v2151
                  %v2153 = vld [vmem:[%s2105 + $0xb8] sm:$0xff]
                  %2154 = vst [vmem:[%s2106 + $0xb8] sm:$0xff] %v2153
                  %v2155 = vld [vmem:[%s2105 + $0xc0] sm:$0xff]
                  %2156 = vst [vmem:[%s2106 + $0xc0] sm:$0xff] %v2155
                  %v2157 = vld [vmem:[%s2105 + $0xc8] sm:$0xff]
                  %2158 = vst [vmem:[%s2106 + $0xc8] sm:$0xff] %v2157
                  %v2159 = vld [vmem:[%s2105 + $0xd0] sm:$0xff]
                  %2160 = vst [vmem:[%s2106 + $0xd0] sm:$0xff] %v2159
                  %v2161 = vld [vmem:[%s2105 + $0xd8] sm:$0xff]
                  %2162 = vst [vmem:[%s2106 + $0xd8] sm:$0xff] %v2161
                  %v2163 = vld [vmem:[%s2105 + $0xe0] sm:$0xff]
                  %2164 = vst [vmem:[%s2106 + $0xe0] sm:$0xff] %v2163
                  %v2165 = vld [vmem:[%s2105 + $0xe8] sm:$0xff]
                  %2166 = vst [vmem:[%s2106 + $0xe8] sm:$0xff] %v2165
                  %v2167 = vld [vmem:[%s2105 + $0xf0] sm:$0xff]
                  %2168 = vst [vmem:[%s2106 + $0xf0] sm:$0xff] %v2167
                  %v2169 = vld [vmem:[%s2105 + $0xf8] sm:$0xff]
                  %2170 = vst [vmem:[%s2106 + $0xf8] sm:$0xff] %v2169
                  %s2171 = sadd.s32 1, %s2104
                  %p2172 = scmp.ge.s32.totalorder %s2171, %s2097
                  %s2173 = scalar_select %p2172, 0, %s2171
                  %s2174 = smul.u32 %s2173, 256
                  %s2175 = smul.u32 %s2173, 256
                  %s2176 = scalar_lea.vmem %s1968, %s2174 [#allocation2]
                  %s2177 = scalar_lea.vmem %s1979, %s2175
                $region95: #{mc_init_embedding2.1} parent=89 // loop_footer
                  %s2101 = sadd.s32 %s2099, 1
                $region96: #{mc_init_embedding2.1} parent=89 // loop_footer_branch
                  %2098 = sbr.rel target = $region92
                $region97: #{mc_init_embedding2.1} parent=89 // loop_exit
                  _
                %s2178 = sshrl.u32 %s1975, 5
                %s2179 = sand.u32 %s1975, 31
                %s2180 = smul.u32 %s2178, 32
                %s2181 = smul.u32 8, %s2180
                %s2182 = scalar_lea.vmem %s1968, %s2181 [#allocation2]
                %s2183 = smul.u32 8, %s2180
                %s2184 = scalar_lea.vmem %s1979, %s2183
                // While loop
                $region98: #{mc_init_embedding2.1} parent=89 // loop_pre_header
                  _
                $region99: #{mc_init_embedding2.1} parent=89 // loop_header
                  %s2186 = sphi 0, %s2188
                  %p2187 = scmp.ge.s32.totalorder %s2186, %s2179
                  %s2191 = sphi 0, %s2198
                  %s2192 = sphi %s2182, %s2201
                  %s2193 = sphi %s2184, %s2202
                $region100: #{mc_init_embedding2.1} parent=89 // loop_header_branch
                  %2190 = sbr.rel (%p2187) target = $region104
                $region101: #{mc_init_embedding2.1} parent=89 // loop_body
                  %v2194 = vld [vmem:[%s2192] sm:$0xff]
                  %2195 = vst [vmem:[%s2193] sm:$0xff] %v2194
                  %s2196 = sadd.s32 1, %s2191
                  %p2197 = scmp.ge.s32.totalorder %s2196, %s2179
                  %s2198 = scalar_select %p2197, 0, %s2196
                  %s2199 = smul.u32 %s2198, 8
                  %s2200 = smul.u32 %s2198, 8
                  %s2201 = scalar_lea.vmem %s2182, %s2199 [#allocation2]
                  %s2202 = scalar_lea.vmem %s2184, %s2200
                $region102: #{mc_init_embedding2.1} parent=89 // loop_footer
                  %s2188 = sadd.s32 %s2186, 1
                $region103: #{mc_init_embedding2.1} parent=89 // loop_footer_branch
                  %2185 = sbr.rel target = $region99
                $region104: #{mc_init_embedding2.1} parent=89 // loop_exit
                  _
              $region90: #{mc_init_embedding2.1} parent=67 // pred_fallthru
                _
              // Predicated region
              $region105: #{mc_init_embedding2.1} parent=67 // pred_check
                _
              $region106: #{mc_init_embedding2.1} parent=67 // pred_check_branch
                %2204 = sbr.rel target = $region108
              $region107: #{mc_init_embedding2.1} parent=67 // pred_region
                _
              $region108: #{mc_init_embedding2.1} parent=67 // pred_fallthru
                _
            $region68: #{mc_init_embedding2.1} parent=63 // pred_fallthru
              _
            // Predicated region
            $region69: #{mc_init_embedding2.1} parent=63 // pred_check
              _
            $region70: #{mc_init_embedding2.1} parent=63 // pred_check_branch
              %1986 = sbr.rel target = $region72
            $region71: #{mc_init_embedding2.1} parent=63 // pred_region
              %s1988 = ssub.s32 256, 1
              %s1989 = sshrl.u32 %s1975, 5
              // While loop
              $region73: #{mc_init_embedding2.1} parent=71 // loop_pre_header
                _
              $region74: #{mc_init_embedding2.1} parent=71 // loop_header
                %s1991 = sphi 0, %s1993
                %p1992 = scmp.ge.s32.totalorder %s1991, %s1989
                %s1996 = sphi 0, %s2065
                %s1997 = sphi %s1968, %s2068
                %s1998 = sphi %s1979, %s2069
              $region75: #{mc_init_embedding2.1} parent=71 // loop_header_branch
                %1995 = sbr.rel (%p1992) target = $region79
              $region76: #{mc_init_embedding2.1} parent=71 // loop_body
                %v1999 = vld [vmem:[%s1997] sm:%s1988]
                %2000 = vst [vmem:[%s1998] sm:%s1988] %v1999
                %v2001 = vld [vmem:[%s1997 + $0x8] sm:%s1988]
                %2002 = vst [vmem:[%s1998 + $0x8] sm:%s1988] %v2001
                %v2003 = vld [vmem:[%s1997 + $0x10] sm:%s1988]
                %2004 = vst [vmem:[%s1998 + $0x10] sm:%s1988] %v2003
                %v2005 = vld [vmem:[%s1997 + $0x18] sm:%s1988]
                %2006 = vst [vmem:[%s1998 + $0x18] sm:%s1988] %v2005
                %v2007 = vld [vmem:[%s1997 + $0x20] sm:%s1988]
                %2008 = vst [vmem:[%s1998 + $0x20] sm:%s1988] %v2007
                %v2009 = vld [vmem:[%s1997 + $0x28] sm:%s1988]
                %2010 = vst [vmem:[%s1998 + $0x28] sm:%s1988] %v2009
                %v2011 = vld [vmem:[%s1997 + $0x30] sm:%s1988]
                %2012 = vst [vmem:[%s1998 + $0x30] sm:%s1988] %v2011
                %v2013 = vld [vmem:[%s1997 + $0x38] sm:%s1988]
                %2014 = vst [vmem:[%s1998 + $0x38] sm:%s1988] %v2013
                %v2015 = vld [vmem:[%s1997 + $0x40] sm:%s1988]
                %2016 = vst [vmem:[%s1998 + $0x40] sm:%s1988] %v2015
                %v2017 = vld [vmem:[%s1997 + $0x48] sm:%s1988]
                %2018 = vst [vmem:[%s1998 + $0x48] sm:%s1988] %v2017
                %v2019 = vld [vmem:[%s1997 + $0x50] sm:%s1988]
                %2020 = vst [vmem:[%s1998 + $0x50] sm:%s1988] %v2019
                %v2021 = vld [vmem:[%s1997 + $0x58] sm:%s1988]
                %2022 = vst [vmem:[%s1998 + $0x58] sm:%s1988] %v2021
                %v2023 = vld [vmem:[%s1997 + $0x60] sm:%s1988]
                %2024 = vst [vmem:[%s1998 + $0x60] sm:%s1988] %v2023
                %v2025 = vld [vmem:[%s1997 + $0x68] sm:%s1988]
                %2026 = vst [vmem:[%s1998 + $0x68] sm:%s1988] %v2025
                %v2027 = vld [vmem:[%s1997 + $0x70] sm:%s1988]
                %2028 = vst [vmem:[%s1998 + $0x70] sm:%s1988] %v2027
                %v2029 = vld [vmem:[%s1997 + $0x78] sm:%s1988]
                %2030 = vst [vmem:[%s1998 + $0x78] sm:%s1988] %v2029
                %v2031 = vld [vmem:[%s1997 + $0x80] sm:%s1988]
                %2032 = vst [vmem:[%s1998 + $0x80] sm:%s1988] %v2031
                %v2033 = vld [vmem:[%s1997 + $0x88] sm:%s1988]
                %2034 = vst [vmem:[%s1998 + $0x88] sm:%s1988] %v2033
                %v2035 = vld [vmem:[%s1997 + $0x90] sm:%s1988]
                %2036 = vst [vmem:[%s1998 + $0x90] sm:%s1988] %v2035
                %v2037 = vld [vmem:[%s1997 + $0x98] sm:%s1988]
                %2038 = vst [vmem:[%s1998 + $0x98] sm:%s1988] %v2037
                %v2039 = vld [vmem:[%s1997 + $0xa0] sm:%s1988]
                %2040 = vst [vmem:[%s1998 + $0xa0] sm:%s1988] %v2039
                %v2041 = vld [vmem:[%s1997 + $0xa8] sm:%s1988]
                %2042 = vst [vmem:[%s1998 + $0xa8] sm:%s1988] %v2041
                %v2043 = vld [vmem:[%s1997 + $0xb0] sm:%s1988]
                %2044 = vst [vmem:[%s1998 + $0xb0] sm:%s1988] %v2043
                %v2045 = vld [vmem:[%s1997 + $0xb8] sm:%s1988]
                %2046 = vst [vmem:[%s1998 + $0xb8] sm:%s1988] %v2045
                %v2047 = vld [vmem:[%s1997 + $0xc0] sm:%s1988]
                %2048 = vst [vmem:[%s1998 + $0xc0] sm:%s1988] %v2047
                %v2049 = vld [vmem:[%s1997 + $0xc8] sm:%s1988]
                %2050 = vst [vmem:[%s1998 + $0xc8] sm:%s1988] %v2049
                %v2051 = vld [vmem:[%s1997 + $0xd0] sm:%s1988]
                %2052 = vst [vmem:[%s1998 + $0xd0] sm:%s1988] %v2051
                %v2053 = vld [vmem:[%s1997 + $0xd8] sm:%s1988]
                %2054 = vst [vmem:[%s1998 + $0xd8] sm:%s1988] %v2053
                %v2055 = vld [vmem:[%s1997 + $0xe0] sm:%s1988]
                %2056 = vst [vmem:[%s1998 + $0xe0] sm:%s1988] %v2055
                %v2057 = vld [vmem:[%s1997 + $0xe8] sm:%s1988]
                %2058 = vst [vmem:[%s1998 + $0xe8] sm:%s1988] %v2057
                %v2059 = vld [vmem:[%s1997 + $0xf0] sm:%s1988]
                %2060 = vst [vmem:[%s1998 + $0xf0] sm:%s1988] %v2059
                %v2061 = vld [vmem:[%s1997 + $0xf8] sm:%s1988]
                %2062 = vst [vmem:[%s1998 + $0xf8] sm:%s1988] %v2061
                %s2063 = sadd.s32 1, %s1996
                %p2064 = scmp.ge.s32.totalorder %s2063, %s1989
                %s2065 = scalar_select %p2064, 0, %s2063
                %s2066 = smul.u32 %s2065, 256
                %s2067 = smul.u32 %s2065, 256
                %s2068 = scalar_lea.vmem %s1968, %s2066 [#allocation2]
                %s2069 = scalar_lea.vmem %s1979, %s2067
              $region77: #{mc_init_embedding2.1} parent=71 // loop_footer
                %s1993 = sadd.s32 %s1991, 1
              $region78: #{mc_init_embedding2.1} parent=71 // loop_footer_branch
                %1990 = sbr.rel target = $region74
              $region79: #{mc_init_embedding2.1} parent=71 // loop_exit
                _
              %s2070 = sshrl.u32 %s1975, 5
              %s2071 = sand.u32 %s1975, 31
              %s2072 = smul.u32 %s2070, 32
              %s2073 = smul.u32 8, %s2072
              %s2074 = scalar_lea.vmem %s1968, %s2073 [#allocation2]
              %s2075 = smul.u32 8, %s2072
              %s2076 = scalar_lea.vmem %s1979, %s2075
              // While loop
              $region80: #{mc_init_embedding2.1} parent=71 // loop_pre_header
                _
              $region81: #{mc_init_embedding2.1} parent=71 // loop_header
                %s2078 = sphi 0, %s2080
                %p2079 = scmp.ge.s32.totalorder %s2078, %s2071
                %s2083 = sphi 0, %s2090
                %s2084 = sphi %s2074, %s2093
                %s2085 = sphi %s2076, %s2094
              $region82: #{mc_init_embedding2.1} parent=71 // loop_header_branch
                %2082 = sbr.rel (%p2079) target = $region86
              $region83: #{mc_init_embedding2.1} parent=71 // loop_body
                %v2086 = vld [vmem:[%s2084] sm:%s1988]
                %2087 = vst [vmem:[%s2085] sm:%s1988] %v2086
                %s2088 = sadd.s32 1, %s2083
                %p2089 = scmp.ge.s32.totalorder %s2088, %s2071
                %s2090 = scalar_select %p2089, 0, %s2088
                %s2091 = smul.u32 %s2090, 8
                %s2092 = smul.u32 %s2090, 8
                %s2093 = scalar_lea.vmem %s2074, %s2091 [#allocation2]
                %s2094 = scalar_lea.vmem %s2076, %s2092
              $region84: #{mc_init_embedding2.1} parent=71 // loop_footer
                %s2080 = sadd.s32 %s2078, 1
              $region85: #{mc_init_embedding2.1} parent=71 // loop_footer_branch
                %2077 = sbr.rel target = $region81
              $region86: #{mc_init_embedding2.1} parent=71 // loop_exit
                _
            $region72: #{mc_init_embedding2.1} parent=63 // pred_fallthru
              _
          $region64: #{mc_init_embedding2.1} parent=59 // pred_fallthru
            _
          %2205 = vnop
        $region60: #{mc_init_embedding2.1} parent=55 // pred_fallthru
          _
      $region56: #{mc_init_embedding2.1} parent=5 // pred_fallthru
        _
      %p2206 = scmp.le.s32.totalorder 2, %s15
      // Predicated region
      $region109: #{mc_init_embedding2.1} parent=5 // pred_check
        %p2207 = pneg %p2206
      $region110: #{mc_init_embedding2.1} parent=5 // pred_check_branch
        %2209 = sbr.rel (%p2207) target = $region112
      $region111: #{mc_init_embedding2.1} parent=5 // pred_region
        %s2210 = ssub.s32 %s15, 2
        // Predicated region
        $region113: #{mc_init_embedding2.1} parent=111 // pred_check
          %p2211 = pneg %p243
        $region114: #{mc_init_embedding2.1} parent=111 // pred_check_branch
          %2213 = sbr.rel (%p2211) target = $region116
        $region115: #{mc_init_embedding2.1} parent=111 // pred_region
          %s2214 = sand.u32 %s228, 1
          %s2215 = sand.u32 %s228, 1
          %s2216 = smul.addr %s2215, 256
          %s2217 = scalar_lea.vmem [#allocation2], %s2216
        $region116: #{mc_init_embedding2.1} parent=111 // pred_fallthru
          _
      $region112: #{mc_init_embedding2.1} parent=5 // pred_fallthru
        _
    $region6: #{mc_init_embedding2.1} parent=1 // loop_footer
      %s19 = sadd.s32 1, %s15
    $region7: #{mc_init_embedding2.1} parent=1 // loop_footer_branch
      %14 = sbr.rel target = $region3
    $region8: #{mc_init_embedding2.1} parent=1 // loop_exit
      _

</llo_original>
